<compile_context>
chip_gen: v7x
topology: tpu7x:2x2x1
jax: 0.10.0
libtpu: 0.0.40
codegen_flags: <defaults>
</compile_context>

<pallas_src>
import functools
import math

import jax
import jax.numpy as jnp
from jax import lax
from jax.experimental import pallas as pl
from jax.experimental.pallas import tpu as pltpu


# ----------------------------- fused model kernel ------------------------------


def _fused_update_net_kernel(
    # inputs
    x_ref,                                                   # (Bt, S, n_in) f32
    we0_ref, be0_ref, we1_ref, be1_ref,                      # embedder MLP (shared)
    wqkv_ref, bqkv_ref,                                      # (E,3E) bf16, (1,3E) f32   per layer
    wo_ref,                                                  # (E,E) bf16                per layer
    w1_ref, b1_ref, w2_ref,                                  # FFN                       per layer
    vec_ref,                                                 # (6,E) f32: bo,ln1g,ln1b,b2,ln2g,ln2b
    wp0_ref, bp0_ref, wp1_ref, bp1_ref, wp2_ref, bp2_ref,    # predicter MLP (shared, lane-padded)
    # outputs
    o_ref,                                                   # (Bt, S, NPAD) f32
    # scratch
    h_sc,                                                    # (Bt*S, E) f32  carried activation
    mask_sc,                                                 # (S, S) f32     additive causal mask
    *, num_heads,
):
    l = pl.program_id(1)
    n_layers = pl.num_programs(1)
    Bt, S, n_in = x_ref.shape
    M, E = h_sc.shape                                        # M = Bt * S
    H = num_heads
    D = E // H
    bf16 = jnp.bfloat16

    # ---------------- layer 0: build mask once + run embedder MLP ----------------
    @pl.when(l == 0)
    def _init():
        row = lax.broadcasted_iota(jnp.int32, (S, S), 0)
        col = lax.broadcasted_iota(jnp.int32, (S, S), 1)
        mask_sc[...] = jnp.where(col <= row, 0.0, -1e30).astype(jnp.float32)

        xb = x_ref[...].reshape(M, n_in)                     # f32
        if n_in == 1:
            # K=1 matmul wastes the whole MXU -> broadcast VPU multiply instead.
            e0 = xb * we0_ref[...] + be0_ref[...]            # (M,1)*(1,2E) -> (M,2E)
        else:
            e0 = jnp.dot(xb, we0_ref[...],
                         preferred_element_type=jnp.float32) + be0_ref[...]
        e0 = jnp.maximum(e0, 0.0)
        e1 = jnp.dot(e0.astype(bf16), we1_ref[...],
                     preferred_element_type=jnp.float32) + be1_ref[...]
        h_sc[...] = e1

    # ---------------- transformer encoder layer l (post-norm, relu) ----------------
    x = h_sc[...]                                            # (M, E) f32
    x_bf = x.astype(bf16)

    # fused lane-dense QKV projection: one (M,E)x(E,3E) MXU matmul
    # (1/sqrt(D) is pre-folded into the q columns of wqkv at init time).
    qkv = jnp.dot(x_bf, wqkv_ref[...],
                  preferred_element_type=jnp.float32) + bqkv_ref[...]     # (M, 3E) f32

    mask = mask_sc[...]                                      # (S, S) additive
    ctx_heads = []
    for h in range(H):                                       # static unroll, H small
        qh = qkv[:, h * D:(h + 1) * D].reshape(Bt, S, D).astype(bf16)
        kh = qkv[:, E + h * D:E + (h + 1) * D].reshape(Bt, S, D).astype(bf16)
        vh = qkv[:, 2 * E + h * D:2 * E + (h + 1) * D].reshape(Bt, S, D).astype(bf16)

        s = jnp.einsum('bqd,bkd->bqk', qh, kh,
                       preferred_element_type=jnp.float32)               # (Bt, S, S)
        s = s + mask                                                     # causal mask
        m = jnp.max(s, axis=-1, keepdims=True)
        p = jnp.exp(s - m)
        denom = jnp.sum(p, axis=-1, keepdims=True)
        p = p * pl.reciprocal(denom, approx=True)
        ctx = jnp.einsum('bqk,bkd->bqd', p.astype(bf16), vh,
                         preferred_element_type=jnp.float32)             # (Bt, S, D)
        ctx_heads.append(ctx.reshape(M, D))

    # concat heads on the lane axis -> single full-width (M,E)x(E,E) out-projection
    ctx_cat = jnp.concatenate(ctx_heads, axis=-1).astype(bf16)           # (M, E)

    bo = vec_ref[0:1, :]
    ln1g = vec_ref[1:2, :]
    ln1b = vec_ref[2:3, :]
    b2 = vec_ref[3:4, :]
    ln2g = vec_ref[4:5, :]
    ln2b = vec_ref[5:6, :]

    attn = jnp.dot(ctx_cat, wo_ref[...],
                   preferred_element_type=jnp.float32) + bo              # (M, E)

    # residual + LayerNorm1 (f32)
    y = x + attn
    mu = jnp.mean(y, axis=-1, keepdims=True)
    var = jnp.mean((y - mu) ** 2, axis=-1, keepdims=True)
    y = (y - mu) * lax.rsqrt(var + 1e-5) * ln1g + ln1b

    # feed-forward (relu)
    ff = jnp.dot(y.astype(bf16), w1_ref[...],
                 preferred_element_type=jnp.float32) + b1_ref[...]
    ff = jnp.maximum(ff, 0.0)
    ff = jnp.dot(ff.astype(bf16), w2_ref[...],
                 preferred_element_type=jnp.float32) + b2

    # residual + LayerNorm2 (f32)
    z = y + ff
    mu2 = jnp.mean(z, axis=-1, keepdims=True)
    var2 = jnp.mean((z - mu2) ** 2, axis=-1, keepdims=True)
    z = (z - mu2) * lax.rsqrt(var2 + 1e-5) * ln2g + ln2b
    h_sc[...] = z

    # ---------------- last layer: predicter MLP, lane-dense padded output ----------------
    @pl.when(l == n_layers - 1)
    def _predict():
        p0 = jnp.dot(z.astype(bf16), wp0_ref[...],
                     preferred_element_type=jnp.float32) + bp0_ref[...]
        p0 = jnp.maximum(p0, 0.0)
        p1 = jnp.dot(p0.astype(bf16), wp1_ref[...],
                     preferred_element_type=jnp.float32) + bp1_ref[...]
        p1 = jnp.maximum(p1, 0.0)
        p2 = jnp.dot(p1.astype(bf16), wp2_ref[...],
                     preferred_element_type=jnp.float32) + bp2_ref[...]
        o_ref[...] = p2.reshape(Bt, S, o_ref.shape[-1])


# ----------------------------- wrapper ------------------------------


def _pick_batch_tile(B, max_bt=8):
    """Largest tile dividing B that keeps the parallel batch extent >= 2 (v7x megacore)."""
    best = 1
    for bt in range(1, min(B, max_bt) + 1):
        if B % bt == 0 and (B // bt >= 2 or B == 1):
            best = bt
    return best


def _nbytes(a):
    return int(a.size) * a.dtype.itemsize


def transformer_update_net(x, params, n_out, num_heads=4, batch_tile=None):
    B, S, n_in = x.shape
    L, E, E3 = params["wqkv"].shape
    assert E3 == 3 * E and E % num_heads == 0
    F = params["w1"].shape[2]                  # 4E
    NPAD = params["wp2"].shape[1]              # lane-dense padded output width

    Bt = _pick_batch_tile(B) if batch_tile is None else batch_tile
    assert B % Bt == 0
    Bgrid = B // Bt

    def c2(b, l): return (0, 0)                # shared (un-stacked) 2-D weights
    def xb3(b, l): return (b, 0, 0)            # per-batch-tile activation / output block
    def l3(b, l): return (l, 0, 0)             # per-layer stacked 3-D weights

    in_specs = [
        pl.BlockSpec((Bt, S, n_in), xb3),      # x
        pl.BlockSpec((n_in, 2 * E), c2),       # we0
        pl.BlockSpec((1, 2 * E), c2),          # be0
        pl.BlockSpec((2 * E, E), c2),          # we1
        pl.BlockSpec((1, E), c2),              # be1
        pl.BlockSpec((None, E, 3 * E), l3),    # wqkv (scale folded into q cols)
        pl.BlockSpec((None, 1, 3 * E), l3),    # bqkv
        pl.BlockSpec((None, E, E), l3),        # wo
        pl.BlockSpec((None, E, F), l3),        # w1
        pl.BlockSpec((None, 1, F), l3),        # b1
        pl.BlockSpec((None, F, E), l3),        # w2
        pl.BlockSpec((None, 6, E), l3),        # packed vectors: bo,ln1g,ln1b,b2,ln2g,ln2b
        pl.BlockSpec((E, 2 * E), c2),          # wp0
        pl.BlockSpec((1, 2 * E), c2),          # bp0
        pl.BlockSpec((2 * E, 2 * E), c2),      # wp1
        pl.BlockSpec((1, 2 * E), c2),          # bp1
        pl.BlockSpec((2 * E, NPAD), c2),       # wp2 (zero-padded to NPAD cols)
        pl.BlockSpec((1, NPAD), c2),           # bp2
    ]

    # Explicit VMEM budget: 2x (double-buffered) per-layer weights + resident shared
    # weights + activation/mask scratch + score headroom, clamped to a safe range.
    per_layer_keys = ("wqkv", "bqkv", "wo", "w1", "b1", "w2", "vecs")
    shared_keys = ("we0", "be0", "we1", "be1", "wp0", "bp0", "wp1", "bp1", "wp2", "bp2")
    per_layer_bytes = sum(_nbytes(params[k]) for k in per_layer_keys) // L
    shared_bytes = sum(_nbytes(params[k]) for k in shared_keys)
    act_bytes = (Bt * S * E * 4 + S * S * 4
                 + 2 * Bt * S * n_in * 4 + 2 * Bt * S * NPAD * 4)
    score_bytes = 4 * Bt * S * S * 4
    vmem_limit = 2 * per_layer_bytes + shared_bytes + act_bytes + score_bytes + (4 << 20)
    vmem_limit = int(min(max(vmem_limit, 32 << 20), 100 << 20))

    out = pl.pallas_call(
        functools.partial(_fused_update_net_kernel, num_heads=num_heads),
        out_shape=jax.ShapeDtypeStruct((B, S, NPAD), jnp.float32),
        grid=(Bgrid, L),
        in_specs=in_specs,
        out_specs=pl.BlockSpec((Bt, S, NPAD), xb3),
        scratch_shapes=[
            pltpu.VMEM((Bt * S, E), jnp.float32),   # activation carried across the layer axis
            pltpu.VMEM((S, S), jnp.float32),        # additive causal mask
        ],
        compiler_params=pltpu.CompilerParams(
            dimension_semantics=("parallel", "arbitrary"),
            vmem_limit_bytes=vmem_limit,
        ),
    )(
        x,
        params["we0"], params["be0"], params["we1"], params["be1"],
        params["wqkv"], params["bqkv"], params["wo"],
        params["w1"], params["b1"], params["w2"], params["vecs"],
        params["wp0"], params["bp0"], params["wp1"], params["bp1"],
        params["wp2"], params["bp2"],
    )
    return out[:, :, :n_out]


# ----------------------------- params ------------------------------


def init_params(key, n_in, n_embedding, n_out, num_layers=6, num_heads=4):
    E = n_embedding
    H = num_heads
    D = E // H
    L = num_layers
    NPAD = ((n_out + 127) // 128) * 128
    scale = 0.02
    keys = iter(jax.random.split(key, 32))

    def w(shape):
        return scale * jax.random.normal(next(keys), shape, jnp.float32)

    p = {}
    # embedder: Linear(n_in, 2E) -> ReLU -> Linear(2E, E)
    p["we0"] = w((n_in, 2 * E))                               # f32 (tiny-K path stays f32)
    p["be0"] = jnp.zeros((1, 2 * E), jnp.float32)
    p["we1"] = w((2 * E, E)).astype(jnp.bfloat16)
    p["be1"] = jnp.zeros((1, E), jnp.float32)

    # transformer layers (stacked over L).
    # wqkv = in_proj_weight.T with the q columns pre-scaled by 1/sqrt(D).
    wqkv = w((L, E, 3 * E))
    wqkv = wqkv.at[:, :, :E].multiply(1.0 / math.sqrt(D))
    p["wqkv"] = wqkv.astype(jnp.bfloat16)
    p["bqkv"] = jnp.zeros((L, 1, 3 * E), jnp.float32)         # q-part also pre-scaled if nonzero
    p["wo"] = w((L, E, E)).astype(jnp.bfloat16)               # out_proj.weight.T
    p["w1"] = w((L, E, 4 * E)).astype(jnp.bfloat16)
    p["b1"] = jnp.zeros((L, 1, 4 * E), jnp.float32)
    p["w2"] = w((L, 4 * E, E)).astype(jnp.bfloat16)
    # packed per-layer E-wide vectors: rows = [bo, ln1_gamma, ln1_beta, b2, ln2_gamma, ln2_beta]
    vecs = jnp.zeros((L, 6, E), jnp.float32)
    vecs = vecs.at[:, 1, :].set(1.0)                          # ln1 gamma
    vecs = vecs.at[:, 4, :].set(1.0)                          # ln2 gamma
    p["vecs"] = vecs

    # predicter: Linear(E, 2E) -> ReLU -> Linear(2E, 2E) -> ReLU -> Linear(2E, n_out)
    p["wp0"] = w((E, 2 * E)).astype(jnp.bfloat16)
    p["bp0"] = jnp.zeros((1, 2 * E), jnp.float32)
    p["wp1"] = w((2 * E, 2 * E)).astype(jnp.bfloat16)
    p["bp1"] = jnp.zeros((1, 2 * E), jnp.float32)
    wp2 = w((2 * E, n_out))
    p["wp2"] = jnp.zeros((2 * E, NPAD), jnp.float32).at[:, :n_out].set(wp2).astype(jnp.bfloat16)
    p["bp2"] = jnp.zeros((1, NPAD), jnp.float32)
    return p


if __name__ == "__main__":
    # small shapes consistent with the module (n_in=1, n_out=2), scaled down:
    B, S, N_IN, E, N_OUT = 2, 8, 1, 32, 2       # 4 heads -> head_dim = 8

    key = jax.random.PRNGKey(0)
    k_x, k_p = jax.random.split(key)
    x = jax.random.normal(k_x, (B, S, N_IN), jnp.float32)
    params = init_params(k_p, N_IN, E, N_OUT)

    fwd = jax.jit(lambda xx: transformer_update_net(xx, params, N_OUT))
    out = fwd(x)
    jax.block_until_ready(out)
    assert out.shape == (B, S, N_OUT), out.shape
    print("KERNEL_OK")
</pallas_src>

<mosaic_0001>
module attributes {stable_mosaic.version = 11 : i64} {
  func.func @_fused_update_net_kernel(%arg0: i32, %arg1: i32, %arg2: memref<1x8x1xf32, #tpu.memory_space<vmem>>, %arg3: memref<1x64xf32, #tpu.memory_space<vmem>>, %arg4: memref<1x64xf32, #tpu.memory_space<vmem>>, %arg5: memref<64x32xbf16, #tpu.memory_space<vmem>>, %arg6: memref<1x32xf32, #tpu.memory_space<vmem>>, %arg7: memref<1x32x96xbf16, #tpu.memory_space<vmem>>, %arg8: memref<1x1x96xf32, #tpu.memory_space<vmem>>, %arg9: memref<1x32x32xbf16, #tpu.memory_space<vmem>>, %arg10: memref<1x32x128xbf16, #tpu.memory_space<vmem>>, %arg11: memref<1x1x128xf32, #tpu.memory_space<vmem>>, %arg12: memref<1x128x32xbf16, #tpu.memory_space<vmem>>, %arg13: memref<1x6x32xf32, #tpu.memory_space<vmem>>, %arg14: memref<32x64xbf16, #tpu.memory_space<vmem>>, %arg15: memref<1x64xf32, #tpu.memory_space<vmem>>, %arg16: memref<64x64xbf16, #tpu.memory_space<vmem>>, %arg17: memref<1x64xf32, #tpu.memory_space<vmem>>, %arg18: memref<64x128xbf16, #tpu.memory_space<vmem>>, %arg19: memref<1x128xf32, #tpu.memory_space<vmem>>, %arg20: memref<1x8x128xf32, #tpu.memory_space<vmem>>, %arg21: memref<8x32xf32, #tpu.memory_space<vmem>>, %arg22: memref<8x8xf32, #tpu.memory_space<vmem>>) attributes {dimension_semantics = [#tpu.dimension_semantics<parallel>, #tpu.dimension_semantics<arbitrary>], iteration_bounds = array<i64: 2, 6>, scalar_prefetch = 0 : i64, scratch_operands = 2 : i64, tpu.core_type = #tpu.core_type<tc>, window_params = [{transform_indices = @transform_0, window_bounds = array<i64: 1, 8, 1>}, {pipeline_mode = #tpu.pipeline_mode<synchronous>, transform_indices = @transform_1, window_bounds = array<i64: 1, 64>}, {pipeline_mode = #tpu.pipeline_mode<synchronous>, transform_indices = @transform_2, window_bounds = array<i64: 1, 64>}, {pipeline_mode = #tpu.pipeline_mode<synchronous>, transform_indices = @transform_3, window_bounds = array<i64: 64, 32>}, {pipeline_mode = #tpu.pipeline_mode<synchronous>, transform_indices = @transform_4, window_bounds = array<i64: 1, 32>}, {transform_indices = @transform_5, window_bounds = array<i64: 1, 32, 96>}, {transform_indices = @transform_6, window_bounds = array<i64: 1, 1, 96>}, {transform_indices = @transform_7, window_bounds = array<i64: 1, 32, 32>}, {transform_indices = @transform_8, window_bounds = array<i64: 1, 32, 128>}, {transform_indices = @transform_9, window_bounds = array<i64: 1, 1, 128>}, {transform_indices = @transform_10, window_bounds = array<i64: 1, 128, 32>}, {transform_indices = @transform_11, window_bounds = array<i64: 1, 6, 32>}, {pipeline_mode = #tpu.pipeline_mode<synchronous>, transform_indices = @transform_12, window_bounds = array<i64: 32, 64>}, {pipeline_mode = #tpu.pipeline_mode<synchronous>, transform_indices = @transform_13, window_bounds = array<i64: 1, 64>}, {pipeline_mode = #tpu.pipeline_mode<synchronous>, transform_indices = @transform_14, window_bounds = array<i64: 64, 64>}, {pipeline_mode = #tpu.pipeline_mode<synchronous>, transform_indices = @transform_15, window_bounds = array<i64: 1, 64>}, {pipeline_mode = #tpu.pipeline_mode<synchronous>, transform_indices = @transform_16, window_bounds = array<i64: 64, 128>}, {pipeline_mode = #tpu.pipeline_mode<synchronous>, transform_indices = @transform_17, window_bounds = array<i64: 1, 128>}, {transform_indices = @transform_18, window_bounds = array<i64: 1, 8, 128>}]} {
    %c0_i32 = arith.constant 0 : i32
    %0 = arith.cmpi eq, %arg1, %c0_i32 : i32
    %1 = arith.extui %0 : i1 to i32
    %c0_i32_0 = arith.constant 0 : i32
    %2 = arith.cmpi ne, %1, %c0_i32_0 : i32
    scf.if %2 {
      %198 = tpu.iota {dimensions = array<i32: 0>} : vector<8x8xi32>
      %199 = tpu.iota {dimensions = array<i32: 1>} : vector<8x8xi32>
      %200 = arith.cmpi sle, %199, %198 : vector<8x8xi32>
      %cst_68 = arith.constant 0.000000e+00 : f32
      %cst_69 = arith.constant -1.000000e+30 : f32
      %201 = vector.broadcast %cst_68 : f32 to vector<8x8xf32>
      %202 = vector.broadcast %cst_69 : f32 to vector<8x8xf32>
      %203 = arith.select %200, %201, %202 : vector<8x8xi1>, vector<8x8xf32>
      %c0_70 = arith.constant 0 : index
      %c0_71 = arith.constant 0 : index
      %204 = vector.load %arg22[%c0_70, %c0_71] : memref<8x8xf32, #tpu.memory_space<vmem>>, vector<8x8xf32>
      tpu.vector_store %arg22[%c0_70, %c0_71], %203 {strides = array<i32>} : memref<8x8xf32, #tpu.memory_space<vmem>>, vector<8x8xf32>,
      %c0_72 = arith.constant 0 : index
      %c0_73 = arith.constant 0 : index
      %c0_74 = arith.constant 0 : index
      %205 = vector.load %arg2[%c0_72, %c0_73, %c0_74] : memref<1x8x1xf32, #tpu.memory_space<vmem>>, vector<1x8x1xf32>
      %206 = vector.shape_cast %205 : vector<1x8x1xf32> to vector<8x1xf32>
      %c0_75 = arith.constant 0 : index
      %c0_76 = arith.constant 0 : index
      %207 = vector.load %arg3[%c0_75, %c0_76] : memref<1x64xf32, #tpu.memory_space<vmem>>, vector<1x64xf32>
      %208 = vector.broadcast %206 : vector<8x1xf32> to vector<8x64xf32>
      %209 = vector.broadcast %207 : vector<1x64xf32> to vector<8x64xf32>
      %210 = arith.mulf %208, %209 : vector<8x64xf32>
      %c0_77 = arith.constant 0 : index
      %c0_78 = arith.constant 0 : index
      %211 = vector.load %arg4[%c0_77, %c0_78] : memref<1x64xf32, #tpu.memory_space<vmem>>, vector<1x64xf32>
      %212 = vector.broadcast %211 : vector<1x64xf32> to vector<8x64xf32>
      %213 = arith.addf %210, %212 : vector<8x64xf32>
      %cst_79 = arith.constant 0.000000e+00 : f32
      %214 = vector.broadcast %cst_79 : f32 to vector<8x64xf32>
      %215 = arith.maximumf %213, %214 : vector<8x64xf32>
      %216 = arith.truncf %215 : vector<8x64xf32> to vector<8x64xbf16>
      %c0_80 = arith.constant 0 : index
      %c0_81 = arith.constant 0 : index
      %217 = vector.load %arg5[%c0_80, %c0_81] : memref<64x32xbf16, #tpu.memory_space<vmem>>, vector<64x32xbf16>
      %cst_82 = arith.constant dense<0.000000e+00> : vector<8x32xf32>
      %218 = tpu.matmul %216, %217, %cst_82 {dimension_numbers = #tpu.dot_dimension_numbers<[1], [0], [0], [1], [0, 0, 1, 1], [], []>} : vector<8x64xbf16>, vector<64x32xbf16>, vector<8x32xf32> -> vector<8x32xf32>
      %c0_83 = arith.constant 0 : index
      %c0_84 = arith.constant 0 : index
      %219 = vector.load %arg6[%c0_83, %c0_84] : memref<1x32xf32, #tpu.memory_space<vmem>>, vector<1x32xf32>
      %220 = vector.broadcast %219 : vector<1x32xf32> to vector<8x32xf32>
      %221 = arith.addf %218, %220 : vector<8x32xf32>
      %c0_85 = arith.constant 0 : index
      %c0_86 = arith.constant 0 : index
      %222 = vector.load %arg21[%c0_85, %c0_86] : memref<8x32xf32, #tpu.memory_space<vmem>>, vector<8x32xf32>
      tpu.vector_store %arg21[%c0_85, %c0_86], %221 {strides = array<i32>} : memref<8x32xf32, #tpu.memory_space<vmem>>, vector<8x32xf32>,
    } else {
    }
    %c0 = arith.constant 0 : index
    %c0_1 = arith.constant 0 : index
    %3 = vector.load %arg21[%c0, %c0_1] : memref<8x32xf32, #tpu.memory_space<vmem>>, vector<8x32xf32>
    %4 = arith.truncf %3 : vector<8x32xf32> to vector<8x32xbf16>
    %c0_2 = arith.constant 0 : index
    %c0_3 = arith.constant 0 : index
    %c0_4 = arith.constant 0 : index
    %5 = vector.load %arg7[%c0_2, %c0_3, %c0_4] : memref<1x32x96xbf16, #tpu.memory_space<vmem>>, vector<1x32x96xbf16>
    %6 = vector.shape_cast %5 : vector<1x32x96xbf16> to vector<32x96xbf16>
    %cst = arith.constant dense<0.000000e+00> : vector<8x96xf32>
    %7 = tpu.matmul %4, %6, %cst {dimension_numbers = #tpu.dot_dimension_numbers<[1], [0], [0], [1], [0, 0, 1, 1], [], []>} : vector<8x32xbf16>, vector<32x96xbf16>, vector<8x96xf32> -> vector<8x96xf32>
    %c0_5 = arith.constant 0 : index
    %c0_6 = arith.constant 0 : index
    %c0_7 = arith.constant 0 : index
    %8 = vector.load %arg8[%c0_5, %c0_6, %c0_7] : memref<1x1x96xf32, #tpu.memory_space<vmem>>, vector<1x1x96xf32>
    %9 = vector.shape_cast %8 : vector<1x1x96xf32> to vector<1x96xf32>
    %10 = vector.broadcast %9 : vector<1x96xf32> to vector<8x96xf32>
    %11 = arith.addf %7, %10 : vector<8x96xf32>
    %c0_8 = arith.constant 0 : index
    %c0_9 = arith.constant 0 : index
    %12 = vector.load %arg22[%c0_8, %c0_9] : memref<8x8xf32, #tpu.memory_space<vmem>>, vector<8x8xf32>
    %13 = vector.extract_strided_slice %11 {offsets = [0, 0], sizes = [8, 8], strides = [1, 1]} : vector<8x96xf32> to vector<8x8xf32>
    %14 = vector.shape_cast %13 : vector<8x8xf32> to vector<1x8x8xf32>
    %15 = arith.truncf %14 : vector<1x8x8xf32> to vector<1x8x8xbf16>
    %16 = vector.extract_strided_slice %11 {offsets = [0, 32], sizes = [8, 8], strides = [1, 1]} : vector<8x96xf32> to vector<8x8xf32>
    %17 = vector.shape_cast %16 : vector<8x8xf32> to vector<1x8x8xf32>
    %18 = arith.truncf %17 : vector<1x8x8xf32> to vector<1x8x8xbf16>
    %19 = vector.extract_strided_slice %11 {offsets = [0, 64], sizes = [8, 8], strides = [1, 1]} : vector<8x96xf32> to vector<8x8xf32>
    %20 = vector.shape_cast %19 : vector<8x8xf32> to vector<1x8x8xf32>
    %21 = arith.truncf %20 : vector<1x8x8xf32> to vector<1x8x8xbf16>
    "tpu.trace_start"() <{level = 10 : i32, message = "bqd,bkd->bqk"}> : () -> ()
    %cst_10 = arith.constant dense<0.000000e+00> : vector<1x8x8xf32>
    %22 = tpu.matmul %15, %18, %cst_10 {dimension_numbers = #tpu.dot_dimension_numbers<[2], [2], [1], [1], [0, 0, 0, 1, 1, 1], [0], [0]>} : vector<1x8x8xbf16>, vector<1x8x8xbf16>, vector<1x8x8xf32> -> vector<1x8x8xf32>
    "tpu.trace_stop"() : () -> ()
    %23 = vector.shape_cast %12 : vector<8x8xf32> to vector<1x8x8xf32>
    %24 = arith.addf %22, %23 : vector<1x8x8xf32>
    %cst_11 = arith.constant dense<0xFF800000> : vector<1x8xf32>
    %25 = vector.multi_reduction <maximumf>, %24, %cst_11 [2] : vector<1x8x8xf32> to vector<1x8xf32>
    %26 = vector.shape_cast %25 : vector<1x8xf32> to vector<1x8x1xf32>
    %27 = vector.broadcast %26 : vector<1x8x1xf32> to vector<1x8x8xf32>
    %28 = arith.subf %24, %27 : vector<1x8x8xf32>
    %29 = math.exp %28 : vector<1x8x8xf32>
    %cst_12 = arith.constant dense<0.000000e+00> : vector<1x8xf32>
    %30 = vector.multi_reduction <add>, %29, %cst_12 [2] : vector<1x8x8xf32> to vector<1x8xf32>
    %31 = vector.shape_cast %30 : vector<1x8xf32> to vector<1x8x1xf32>
    %32 = tpu.reciprocal %31 {approx = true} : vector<1x8x1xf32> -> vector<1x8x1xf32>
    %33 = vector.broadcast %32 : vector<1x8x1xf32> to vector<1x8x8xf32>
    %34 = arith.mulf %29, %33 : vector<1x8x8xf32>
    %35 = arith.truncf %34 : vector<1x8x8xf32> to vector<1x8x8xbf16>
    "tpu.trace_start"() <{level = 10 : i32, message = "bqk,bkd->bqd"}> : () -> ()
    %cst_13 = arith.constant dense<0.000000e+00> : vector<1x8x8xf32>
    %36 = tpu.matmul %35, %21, %cst_13 {dimension_numbers = #tpu.dot_dimension_numbers<[2], [1], [1], [2], [0, 0, 0, 1, 1, 2], [0], [0]>} : vector<1x8x8xbf16>, vector<1x8x8xbf16>, vector<1x8x8xf32> -> vector<1x8x8xf32>
    "tpu.trace_stop"() : () -> ()
    %37 = vector.shape_cast %36 : vector<1x8x8xf32> to vector<8x8xf32>
    %38 = vector.extract_strided_slice %11 {offsets = [0, 8], sizes = [8, 8], strides = [1, 1]} : vector<8x96xf32> to vector<8x8xf32>
    %39 = vector.shape_cast %38 : vector<8x8xf32> to vector<1x8x8xf32>
    %40 = arith.truncf %39 : vector<1x8x8xf32> to vector<1x8x8xbf16>
    %41 = vector.extract_strided_slice %11 {offsets = [0, 40], sizes = [8, 8], strides = [1, 1]} : vector<8x96xf32> to vector<8x8xf32>
    %42 = vector.shape_cast %41 : vector<8x8xf32> to vector<1x8x8xf32>
    %43 = arith.truncf %42 : vector<1x8x8xf32> to vector<1x8x8xbf16>
    %44 = vector.extract_strided_slice %11 {offsets = [0, 72], sizes = [8, 8], strides = [1, 1]} : vector<8x96xf32> to vector<8x8xf32>
    %45 = vector.shape_cast %44 : vector<8x8xf32> to vector<1x8x8xf32>
    %46 = arith.truncf %45 : vector<1x8x8xf32> to vector<1x8x8xbf16>
    "tpu.trace_start"() <{level = 10 : i32, message = "bqd,bkd->bqk"}> : () -> ()
    %cst_14 = arith.constant dense<0.000000e+00> : vector<1x8x8xf32>
    %47 = tpu.matmul %40, %43, %cst_14 {dimension_numbers = #tpu.dot_dimension_numbers<[2], [2], [1], [1], [0, 0, 0, 1, 1, 1], [0], [0]>} : vector<1x8x8xbf16>, vector<1x8x8xbf16>, vector<1x8x8xf32> -> vector<1x8x8xf32>
    "tpu.trace_stop"() : () -> ()
    %48 = vector.shape_cast %12 : vector<8x8xf32> to vector<1x8x8xf32>
    %49 = arith.addf %47, %48 : vector<1x8x8xf32>
    %cst_15 = arith.constant dense<0xFF800000> : vector<1x8xf32>
    %50 = vector.multi_reduction <maximumf>, %49, %cst_15 [2] : vector<1x8x8xf32> to vector<1x8xf32>
    %51 = vector.shape_cast %50 : vector<1x8xf32> to vector<1x8x1xf32>
    %52 = vector.broadcast %51 : vector<1x8x1xf32> to vector<1x8x8xf32>
    %53 = arith.subf %49, %52 : vector<1x8x8xf32>
    %54 = math.exp %53 : vector<1x8x8xf32>
    %cst_16 = arith.constant dense<0.000000e+00> : vector<1x8xf32>
    %55 = vector.multi_reduction <add>, %54, %cst_16 [2] : vector<1x8x8xf32> to vector<1x8xf32>
    %56 = vector.shape_cast %55 : vector<1x8xf32> to vector<1x8x1xf32>
    %57 = tpu.reciprocal %56 {approx = true} : vector<1x8x1xf32> -> vector<1x8x1xf32>
    %58 = vector.broadcast %57 : vector<1x8x1xf32> to vector<1x8x8xf32>
    %59 = arith.mulf %54, %58 : vector<1x8x8xf32>
    %60 = arith.truncf %59 : vector<1x8x8xf32> to vector<1x8x8xbf16>
    "tpu.trace_start"() <{level = 10 : i32, message = "bqk,bkd->bqd"}> : () -> ()
    %cst_17 = arith.constant dense<0.000000e+00> : vector<1x8x8xf32>
    %61 = tpu.matmul %60, %46, %cst_17 {dimension_numbers = #tpu.dot_dimension_numbers<[2], [1], [1], [2], [0, 0, 0, 1, 1, 2], [0], [0]>} : vector<1x8x8xbf16>, vector<1x8x8xbf16>, vector<1x8x8xf32> -> vector<1x8x8xf32>
    "tpu.trace_stop"() : () -> ()
    %62 = vector.shape_cast %61 : vector<1x8x8xf32> to vector<8x8xf32>
    %63 = vector.extract_strided_slice %11 {offsets = [0, 16], sizes = [8, 8], strides = [1, 1]} : vector<8x96xf32> to vector<8x8xf32>
    %64 = vector.shape_cast %63 : vector<8x8xf32> to vector<1x8x8xf32>
    %65 = arith.truncf %64 : vector<1x8x8xf32> to vector<1x8x8xbf16>
    %66 = vector.extract_strided_slice %11 {offsets = [0, 48], sizes = [8, 8], strides = [1, 1]} : vector<8x96xf32> to vector<8x8xf32>
    %67 = vector.shape_cast %66 : vector<8x8xf32> to vector<1x8x8xf32>
    %68 = arith.truncf %67 : vector<1x8x8xf32> to vector<1x8x8xbf16>
    %69 = vector.extract_strided_slice %11 {offsets = [0, 80], sizes = [8, 8], strides = [1, 1]} : vector<8x96xf32> to vector<8x8xf32>
    %70 = vector.shape_cast %69 : vector<8x8xf32> to vector<1x8x8xf32>
    %71 = arith.truncf %70 : vector<1x8x8xf32> to vector<1x8x8xbf16>
    "tpu.trace_start"() <{level = 10 : i32, message = "bqd,bkd->bqk"}> : () -> ()
    %cst_18 = arith.constant dense<0.000000e+00> : vector<1x8x8xf32>
    %72 = tpu.matmul %65, %68, %cst_18 {dimension_numbers = #tpu.dot_dimension_numbers<[2], [2], [1], [1], [0, 0, 0, 1, 1, 1], [0], [0]>} : vector<1x8x8xbf16>, vector<1x8x8xbf16>, vector<1x8x8xf32> -> vector<1x8x8xf32>
    "tpu.trace_stop"() : () -> ()
    %73 = vector.shape_cast %12 : vector<8x8xf32> to vector<1x8x8xf32>
    %74 = arith.addf %72, %73 : vector<1x8x8xf32>
    %cst_19 = arith.constant dense<0xFF800000> : vector<1x8xf32>
    %75 = vector.multi_reduction <maximumf>, %74, %cst_19 [2] : vector<1x8x8xf32> to vector<1x8xf32>
    %76 = vector.shape_cast %75 : vector<1x8xf32> to vector<1x8x1xf32>
    %77 = vector.broadcast %76 : vector<1x8x1xf32> to vector<1x8x8xf32>
    %78 = arith.subf %74, %77 : vector<1x8x8xf32>
    %79 = math.exp %78 : vector<1x8x8xf32>
    %cst_20 = arith.constant dense<0.000000e+00> : vector<1x8xf32>
    %80 = vector.multi_reduction <add>, %79, %cst_20 [2] : vector<1x8x8xf32> to vector<1x8xf32>
    %81 = vector.shape_cast %80 : vector<1x8xf32> to vector<1x8x1xf32>
    %82 = tpu.reciprocal %81 {approx = true} : vector<1x8x1xf32> -> vector<1x8x1xf32>
    %83 = vector.broadcast %82 : vector<1x8x1xf32> to vector<1x8x8xf32>
    %84 = arith.mulf %79, %83 : vector<1x8x8xf32>
    %85 = arith.truncf %84 : vector<1x8x8xf32> to vector<1x8x8xbf16>
    "tpu.trace_start"() <{level = 10 : i32, message = "bqk,bkd->bqd"}> : () -> ()
    %cst_21 = arith.constant dense<0.000000e+00> : vector<1x8x8xf32>
    %86 = tpu.matmul %85, %71, %cst_21 {dimension_numbers = #tpu.dot_dimension_numbers<[2], [1], [1], [2], [0, 0, 0, 1, 1, 2], [0], [0]>} : vector<1x8x8xbf16>, vector<1x8x8xbf16>, vector<1x8x8xf32> -> vector<1x8x8xf32>
    "tpu.trace_stop"() : () -> ()
    %87 = vector.shape_cast %86 : vector<1x8x8xf32> to vector<8x8xf32>
    %88 = vector.extract_strided_slice %11 {offsets = [0, 24], sizes = [8, 8], strides = [1, 1]} : vector<8x96xf32> to vector<8x8xf32>
    %89 = vector.shape_cast %88 : vector<8x8xf32> to vector<1x8x8xf32>
    %90 = arith.truncf %89 : vector<1x8x8xf32> to vector<1x8x8xbf16>
    %91 = vector.extract_strided_slice %11 {offsets = [0, 56], sizes = [8, 8], strides = [1, 1]} : vector<8x96xf32> to vector<8x8xf32>
    %92 = vector.shape_cast %91 : vector<8x8xf32> to vector<1x8x8xf32>
    %93 = arith.truncf %92 : vector<1x8x8xf32> to vector<1x8x8xbf16>
    %94 = vector.extract_strided_slice %11 {offsets = [0, 88], sizes = [8, 8], strides = [1, 1]} : vector<8x96xf32> to vector<8x8xf32>
    %95 = vector.shape_cast %94 : vector<8x8xf32> to vector<1x8x8xf32>
    %96 = arith.truncf %95 : vector<1x8x8xf32> to vector<1x8x8xbf16>
    "tpu.trace_start"() <{level = 10 : i32, message = "bqd,bkd->bqk"}> : () -> ()
    %cst_22 = arith.constant dense<0.000000e+00> : vector<1x8x8xf32>
    %97 = tpu.matmul %90, %93, %cst_22 {dimension_numbers = #tpu.dot_dimension_numbers<[2], [2], [1], [1], [0, 0, 0, 1, 1, 1], [0], [0]>} : vector<1x8x8xbf16>, vector<1x8x8xbf16>, vector<1x8x8xf32> -> vector<1x8x8xf32>
    "tpu.trace_stop"() : () -> ()
    %98 = vector.shape_cast %12 : vector<8x8xf32> to vector<1x8x8xf32>
    %99 = arith.addf %97, %98 : vector<1x8x8xf32>
    %cst_23 = arith.constant dense<0xFF800000> : vector<1x8xf32>
    %100 = vector.multi_reduction <maximumf>, %99, %cst_23 [2] : vector<1x8x8xf32> to vector<1x8xf32>
    %101 = vector.shape_cast %100 : vector<1x8xf32> to vector<1x8x1xf32>
    %102 = vector.broadcast %101 : vector<1x8x1xf32> to vector<1x8x8xf32>
    %103 = arith.subf %99, %102 : vector<1x8x8xf32>
    %104 = math.exp %103 : vector<1x8x8xf32>
    %cst_24 = arith.constant dense<0.000000e+00> : vector<1x8xf32>
    %105 = vector.multi_reduction <add>, %104, %cst_24 [2] : vector<1x8x8xf32> to vector<1x8xf32>
    %106 = vector.shape_cast %105 : vector<1x8xf32> to vector<1x8x1xf32>
    %107 = tpu.reciprocal %106 {approx = true} : vector<1x8x1xf32> -> vector<1x8x1xf32>
    %108 = vector.broadcast %107 : vector<1x8x1xf32> to vector<1x8x8xf32>
    %109 = arith.mulf %104, %108 : vector<1x8x8xf32>
    %110 = arith.truncf %109 : vector<1x8x8xf32> to vector<1x8x8xbf16>
    "tpu.trace_start"() <{level = 10 : i32, message = "bqk,bkd->bqd"}> : () -> ()
    %cst_25 = arith.constant dense<0.000000e+00> : vector<1x8x8xf32>
    %111 = tpu.matmul %110, %96, %cst_25 {dimension_numbers = #tpu.dot_dimension_numbers<[2], [1], [1], [2], [0, 0, 0, 1, 1, 2], [0], [0]>} : vector<1x8x8xbf16>, vector<1x8x8xbf16>, vector<1x8x8xf32> -> vector<1x8x8xf32>
    "tpu.trace_stop"() : () -> ()
    %112 = vector.shape_cast %111 : vector<1x8x8xf32> to vector<8x8xf32>
    %113 = tpu.concatenate %37, %62, %87, %112 in 1 : vector<8x8xf32>, vector<8x8xf32>, vector<8x8xf32>, vector<8x8xf32> -> vector<8x32xf32>
    %114 = arith.truncf %113 : vector<8x32xf32> to vector<8x32xbf16>
    %c0_26 = arith.constant 0 : index
    %c0_27 = arith.constant 0 : index
    %c0_28 = arith.constant 0 : index
    %115 = vector.load %arg13[%c0_26, %c0_27, %c0_28] : memref<1x6x32xf32, #tpu.memory_space<vmem>>, vector<1x1x32xf32>
    %116 = vector.shape_cast %115 : vector<1x1x32xf32> to vector<1x32xf32>
    %c0_29 = arith.constant 0 : index
    %c1 = arith.constant 1 : index
    %c0_30 = arith.constant 0 : index
    %117 = vector.load %arg13[%c0_29, %c1, %c0_30] : memref<1x6x32xf32, #tpu.memory_space<vmem>>, vector<1x1x32xf32>
    %118 = vector.shape_cast %117 : vector<1x1x32xf32> to vector<1x32xf32>
    %c0_31 = arith.constant 0 : index
    %c2 = arith.constant 2 : index
    %c0_32 = arith.constant 0 : index
    %119 = vector.load %arg13[%c0_31, %c2, %c0_32] : memref<1x6x32xf32, #tpu.memory_space<vmem>>, vector<1x1x32xf32>
    %120 = vector.shape_cast %119 : vector<1x1x32xf32> to vector<1x32xf32>
    %c0_33 = arith.constant 0 : index
    %c3 = arith.constant 3 : index
    %c0_34 = arith.constant 0 : index
    %121 = vector.load %arg13[%c0_33, %c3, %c0_34] : memref<1x6x32xf32, #tpu.memory_space<vmem>>, vector<1x1x32xf32>
    %122 = vector.shape_cast %121 : vector<1x1x32xf32> to vector<1x32xf32>
    %c0_35 = arith.constant 0 : index
    %c4 = arith.constant 4 : index
    %c0_36 = arith.constant 0 : index
    %123 = vector.load %arg13[%c0_35, %c4, %c0_36] : memref<1x6x32xf32, #tpu.memory_space<vmem>>, vector<1x1x32xf32>
    %124 = vector.shape_cast %123 : vector<1x1x32xf32> to vector<1x32xf32>
    %c0_37 = arith.constant 0 : index
    %c5 = arith.constant 5 : index
    %c0_38 = arith.constant 0 : index
    %125 = vector.load %arg13[%c0_37, %c5, %c0_38] : memref<1x6x32xf32, #tpu.memory_space<vmem>>, vector<1x1x32xf32>
    %126 = vector.shape_cast %125 : vector<1x1x32xf32> to vector<1x32xf32>
    %c0_39 = arith.constant 0 : index
    %c0_40 = arith.constant 0 : index
    %c0_41 = arith.constant 0 : index
    %127 = vector.load %arg9[%c0_39, %c0_40, %c0_41] : memref<1x32x32xbf16, #tpu.memory_space<vmem>>, vector<1x32x32xbf16>
    %128 = vector.shape_cast %127 : vector<1x32x32xbf16> to vector<32x32xbf16>
    %cst_42 = arith.constant dense<0.000000e+00> : vector<8x32xf32>
    %129 = tpu.matmul %114, %128, %cst_42 {dimension_numbers = #tpu.dot_dimension_numbers<[1], [0], [0], [1], [0, 0, 1, 1], [], []>} : vector<8x32xbf16>, vector<32x32xbf16>, vector<8x32xf32> -> vector<8x32xf32>
    %130 = vector.broadcast %116 : vector<1x32xf32> to vector<8x32xf32>
    %131 = arith.addf %129, %130 : vector<8x32xf32>
    %132 = arith.addf %3, %131 : vector<8x32xf32>
    %cst_43 = arith.constant dense<0.000000e+00> : vector<8xf32>
    %133 = vector.multi_reduction <add>, %132, %cst_43 [1] : vector<8x32xf32> to vector<8xf32>
    %134 = vector.shape_cast %133 : vector<8xf32> to vector<8x1xf32>
    %cst_44 = arith.constant 3.200000e+01 : f32
    %135 = vector.broadcast %cst_44 : f32 to vector<8x1xf32>
    %136 = arith.divf %134, %135 : vector<8x1xf32>
    %137 = vector.broadcast %136 : vector<8x1xf32> to vector<8x32xf32>
    %138 = arith.subf %132, %137 : vector<8x32xf32>
    %139 = arith.mulf %138, %138 : vector<8x32xf32>
    %cst_45 = arith.constant dense<0.000000e+00> : vector<8xf32>
    %140 = vector.multi_reduction <add>, %139, %cst_45 [1] : vector<8x32xf32> to vector<8xf32>
    %141 = vector.shape_cast %140 : vector<8xf32> to vector<8x1xf32>
    %cst_46 = arith.constant 3.200000e+01 : f32
    %142 = vector.broadcast %cst_46 : f32 to vector<8x1xf32>
    %143 = arith.divf %141, %142 : vector<8x1xf32>
    %144 = vector.broadcast %136 : vector<8x1xf32> to vector<8x32xf32>
    %145 = arith.subf %132, %144 : vector<8x32xf32>
    %cst_47 = arith.constant 9.99999974E-6 : f32
    %146 = vector.broadcast %cst_47 : f32 to vector<8x1xf32>
    %147 = arith.addf %143, %146 : vector<8x1xf32>
    %148 = math.rsqrt %147 : vector<8x1xf32>
    %149 = vector.broadcast %148 : vector<8x1xf32> to vector<8x32xf32>
    %150 = arith.mulf %145, %149 : vector<8x32xf32>
    %151 = vector.broadcast %118 : vector<1x32xf32> to vector<8x32xf32>
    %152 = arith.mulf %150, %151 : vector<8x32xf32>
    %153 = vector.broadcast %120 : vector<1x32xf32> to vector<8x32xf32>
    %154 = arith.addf %152, %153 : vector<8x32xf32>
    %155 = arith.truncf %154 : vector<8x32xf32> to vector<8x32xbf16>
    %c0_48 = arith.constant 0 : index
    %c0_49 = arith.constant 0 : index
    %c0_50 = arith.constant 0 : index
    %156 = vector.load %arg10[%c0_48, %c0_49, %c0_50] : memref<1x32x128xbf16, #tpu.memory_space<vmem>>, vector<1x32x128xbf16>
    %157 = vector.shape_cast %156 : vector<1x32x128xbf16> to vector<32x128xbf16>
    %cst_51 = arith.constant dense<0.000000e+00> : vector<8x128xf32>
    %158 = tpu.matmul %155, %157, %cst_51 {dimension_numbers = #tpu.dot_dimension_numbers<[1], [0], [0], [1], [0, 0, 1, 1], [], []>} : vector<8x32xbf16>, vector<32x128xbf16>, vector<8x128xf32> -> vector<8x128xf32>
    %c0_52 = arith.constant 0 : index
    %c0_53 = arith.constant 0 : index
    %c0_54 = arith.constant 0 : index
    %159 = vector.load %arg11[%c0_52, %c0_53, %c0_54] : memref<1x1x128xf32, #tpu.memory_space<vmem>>, vector<1x1x128xf32>
    %160 = vector.shape_cast %159 : vector<1x1x128xf32> to vector<1x128xf32>
    %161 = vector.broadcast %160 : vector<1x128xf32> to vector<8x128xf32>
    %162 = arith.addf %158, %161 : vector<8x128xf32>
    %cst_55 = arith.constant 0.000000e+00 : f32
    %163 = vector.broadcast %cst_55 : f32 to vector<8x128xf32>
    %164 = arith.maximumf %162, %163 : vector<8x128xf32>
    %165 = arith.truncf %164 : vector<8x128xf32> to vector<8x128xbf16>
    %c0_56 = arith.constant 0 : index
    %c0_57 = arith.constant 0 : index
    %c0_58 = arith.constant 0 : index
    %166 = vector.load %arg12[%c0_56, %c0_57, %c0_58] : memref<1x128x32xbf16, #tpu.memory_space<vmem>>, vector<1x128x32xbf16>
    %167 = vector.shape_cast %166 : vector<1x128x32xbf16> to vector<128x32xbf16>
    %cst_59 = arith.constant dense<0.000000e+00> : vector<8x32xf32>
    %168 = tpu.matmul %165, %167, %cst_59 {dimension_numbers = #tpu.dot_dimension_numbers<[1], [0], [0], [1], [0, 0, 1, 1], [], []>} : vector<8x128xbf16>, vector<128x32xbf16>, vector<8x32xf32> -> vector<8x32xf32>
    %169 = vector.broadcast %122 : vector<1x32xf32> to vector<8x32xf32>
    %170 = arith.addf %168, %169 : vector<8x32xf32>
    %171 = arith.addf %154, %170 : vector<8x32xf32>
    %cst_60 = arith.constant dense<0.000000e+00> : vector<8xf32>
    %172 = vector.multi_reduction <add>, %171, %cst_60 [1] : vector<8x32xf32> to vector<8xf32>
    %173 = vector.shape_cast %172 : vector<8xf32> to vector<8x1xf32>
    %cst_61 = arith.constant 3.200000e+01 : f32
    %174 = vector.broadcast %cst_61 : f32 to vector<8x1xf32>
    %175 = arith.divf %173, %174 : vector<8x1xf32>
    %176 = vector.broadcast %175 : vector<8x1xf32> to vector<8x32xf32>
    %177 = arith.subf %171, %176 : vector<8x32xf32>
    %178 = arith.mulf %177, %177 : vector<8x32xf32>
    %cst_62 = arith.constant dense<0.000000e+00> : vector<8xf32>
    %179 = vector.multi_reduction <add>, %178, %cst_62 [1] : vector<8x32xf32> to vector<8xf32>
    %180 = vector.shape_cast %179 : vector<8xf32> to vector<8x1xf32>
    %cst_63 = arith.constant 3.200000e+01 : f32
    %181 = vector.broadcast %cst_63 : f32 to vector<8x1xf32>
    %182 = arith.divf %180, %181 : vector<8x1xf32>
    %183 = vector.broadcast %175 : vector<8x1xf32> to vector<8x32xf32>
    %184 = arith.subf %171, %183 : vector<8x32xf32>
    %cst_64 = arith.constant 9.99999974E-6 : f32
    %185 = vector.broadcast %cst_64 : f32 to vector<8x1xf32>
    %186 = arith.addf %182, %185 : vector<8x1xf32>
    %187 = math.rsqrt %186 : vector<8x1xf32>
    %188 = vector.broadcast %187 : vector<8x1xf32> to vector<8x32xf32>
    %189 = arith.mulf %184, %188 : vector<8x32xf32>
    %190 = vector.broadcast %124 : vector<1x32xf32> to vector<8x32xf32>
    %191 = arith.mulf %189, %190 : vector<8x32xf32>
    %192 = vector.broadcast %126 : vector<1x32xf32> to vector<8x32xf32>
    %193 = arith.addf %191, %192 : vector<8x32xf32>
    %c0_65 = arith.constant 0 : index
    %c0_66 = arith.constant 0 : index
    %194 = vector.load %arg21[%c0_65, %c0_66] : memref<8x32xf32, #tpu.memory_space<vmem>>, vector<8x32xf32>
    tpu.vector_store %arg21[%c0_65, %c0_66], %193 {strides = array<i32>} : memref<8x32xf32, #tpu.memory_space<vmem>>, vector<8x32xf32>,
    %c5_i32 = arith.constant 5 : i32
    %195 = arith.cmpi eq, %arg1, %c5_i32 : i32
    %196 = arith.extui %195 : i1 to i32
    %c0_i32_67 = arith.constant 0 : i32
    %197 = arith.cmpi ne, %196, %c0_i32_67 : i32
    scf.if %197 {
      %198 = arith.truncf %193 : vector<8x32xf32> to vector<8x32xbf16>
      %c0_68 = arith.constant 0 : index
      %c0_69 = arith.constant 0 : index
      %199 = vector.load %arg14[%c0_68, %c0_69] : memref<32x64xbf16, #tpu.memory_space<vmem>>, vector<32x64xbf16>
      %cst_70 = arith.constant dense<0.000000e+00> : vector<8x64xf32>
      %200 = tpu.matmul %198, %199, %cst_70 {dimension_numbers = #tpu.dot_dimension_numbers<[1], [0], [0], [1], [0, 0, 1, 1], [], []>} : vector<8x32xbf16>, vector<32x64xbf16>, vector<8x64xf32> -> vector<8x64xf32>
      %c0_71 = arith.constant 0 : index
      %c0_72 = arith.constant 0 : index
      %201 = vector.load %arg15[%c0_71, %c0_72] : memref<1x64xf32, #tpu.memory_space<vmem>>, vector<1x64xf32>
      %202 = vector.broadcast %201 : vector<1x64xf32> to vector<8x64xf32>
      %203 = arith.addf %200, %202 : vector<8x64xf32>
      %cst_73 = arith.constant 0.000000e+00 : f32
      %204 = vector.broadcast %cst_73 : f32 to vector<8x64xf32>
      %205 = arith.maximumf %203, %204 : vector<8x64xf32>
      %206 = arith.truncf %205 : vector<8x64xf32> to vector<8x64xbf16>
      %c0_74 = arith.constant 0 : index
      %c0_75 = arith.constant 0 : index
      %207 = vector.load %arg16[%c0_74, %c0_75] : memref<64x64xbf16, #tpu.memory_space<vmem>>, vector<64x64xbf16>
      %cst_76 = arith.constant dense<0.000000e+00> : vector<8x64xf32>
      %208 = tpu.matmul %206, %207, %cst_76 {dimension_numbers = #tpu.dot_dimension_numbers<[1], [0], [0], [1], [0, 0, 1, 1], [], []>} : vector<8x64xbf16>, vector<64x64xbf16>, vector<8x64xf32> -> vector<8x64xf32>
      %c0_77 = arith.constant 0 : index
      %c0_78 = arith.constant 0 : index
      %209 = vector.load %arg17[%c0_77, %c0_78] : memref<1x64xf32, #tpu.memory_space<vmem>>, vector<1x64xf32>
      %210 = vector.broadcast %209 : vector<1x64xf32> to vector<8x64xf32>
      %211 = arith.addf %208, %210 : vector<8x64xf32>
      %cst_79 = arith.constant 0.000000e+00 : f32
      %212 = vector.broadcast %cst_79 : f32 to vector<8x64xf32>
      %213 = arith.maximumf %211, %212 : vector<8x64xf32>
      %214 = arith.truncf %213 : vector<8x64xf32> to vector<8x64xbf16>
      %c0_80 = arith.constant 0 : index
      %c0_81 = arith.constant 0 : index
      %215 = vector.load %arg18[%c0_80, %c0_81] : memref<64x128xbf16, #tpu.memory_space<vmem>>, vector<64x128xbf16>
      %cst_82 = arith.constant dense<0.000000e+00> : vector<8x128xf32>
      %216 = tpu.matmul %214, %215, %cst_82 {dimension_numbers = #tpu.dot_dimension_numbers<[1], [0], [0], [1], [0, 0, 1, 1], [], []>} : vector<8x64xbf16>, vector<64x128xbf16>, vector<8x128xf32> -> vector<8x128xf32>
      %c0_83 = arith.constant 0 : index
      %c0_84 = arith.constant 0 : index
      %217 = vector.load %arg19[%c0_83, %c0_84] : memref<1x128xf32, #tpu.memory_space<vmem>>, vector<1x128xf32>
      %218 = vector.broadcast %217 : vector<1x128xf32> to vector<8x128xf32>
      %219 = arith.addf %216, %218 : vector<8x128xf32>
      %220 = vector.shape_cast %219 : vector<8x128xf32> to vector<1x8x128xf32>
      %c0_85 = arith.constant 0 : index
      %c0_86 = arith.constant 0 : index
      %c0_87 = arith.constant 0 : index
      %221 = vector.load %arg20[%c0_85, %c0_86, %c0_87] : memref<1x8x128xf32, #tpu.memory_space<vmem>>, vector<1x8x128xf32>
      tpu.vector_store %arg20[%c0_85, %c0_86, %c0_87], %220 {strides = array<i32>} : memref<1x8x128xf32, #tpu.memory_space<vmem>>, vector<1x8x128xf32>,
    } else {
    }
    return
  }
  func.func @transform_0(%arg0: i32, %arg1: i32) -> (i32, i32, i32) {
    %c0_i32 = arith.constant 0 : i32
    %c0_i32_0 = arith.constant 0 : i32
    %c0_i32_1 = arith.constant 0 : i32
    return %arg0, %c0_i32, %c0_i32_0 : i32, i32, i32
  }
  func.func @transform_1(%arg0: i32, %arg1: i32) -> (i32, i32) {
    %c0_i32 = arith.constant 0 : i32
    %c0_i32_0 = arith.constant 0 : i32
    %c0_i32_1 = arith.constant 0 : i32
    return %c0_i32, %c0_i32_0 : i32, i32
  }
  func.func @transform_2(%arg0: i32, %arg1: i32) -> (i32, i32) {
    %c0_i32 = arith.constant 0 : i32
    %c0_i32_0 = arith.constant 0 : i32
    %c0_i32_1 = arith.constant 0 : i32
    return %c0_i32, %c0_i32_0 : i32, i32
  }
  func.func @transform_3(%arg0: i32, %arg1: i32) -> (i32, i32) {
    %c0_i32 = arith.constant 0 : i32
    %c0_i32_0 = arith.constant 0 : i32
    %c0_i32_1 = arith.constant 0 : i32
    return %c0_i32, %c0_i32_0 : i32, i32
  }
  func.func @transform_4(%arg0: i32, %arg1: i32) -> (i32, i32) {
    %c0_i32 = arith.constant 0 : i32
    %c0_i32_0 = arith.constant 0 : i32
    %c0_i32_1 = arith.constant 0 : i32
    return %c0_i32, %c0_i32_0 : i32, i32
  }
  func.func @transform_5(%arg0: i32, %arg1: i32) -> (i32, i32, i32) {
    %c0_i32 = arith.constant 0 : i32
    %c0_i32_0 = arith.constant 0 : i32
    %c0_i32_1 = arith.constant 0 : i32
    return %arg1, %c0_i32, %c0_i32_0 : i32, i32, i32
  }
  func.func @transform_6(%arg0: i32, %arg1: i32) -> (i32, i32, i32) {
    %c0_i32 = arith.constant 0 : i32
    %c0_i32_0 = arith.constant 0 : i32
    %c0_i32_1 = arith.constant 0 : i32
    return %arg1, %c0_i32, %c0_i32_0 : i32, i32, i32
  }
  func.func @transform_7(%arg0: i32, %arg1: i32) -> (i32, i32, i32) {
    %c0_i32 = arith.constant 0 : i32
    %c0_i32_0 = arith.constant 0 : i32
    %c0_i32_1 = arith.constant 0 : i32
    return %arg1, %c0_i32, %c0_i32_0 : i32, i32, i32
  }
  func.func @transform_8(%arg0: i32, %arg1: i32) -> (i32, i32, i32) {
    %c0_i32 = arith.constant 0 : i32
    %c0_i32_0 = arith.constant 0 : i32
    %c0_i32_1 = arith.constant 0 : i32
    return %arg1, %c0_i32, %c0_i32_0 : i32, i32, i32
  }
  func.func @transform_9(%arg0: i32, %arg1: i32) -> (i32, i32, i32) {
    %c0_i32 = arith.constant 0 : i32
    %c0_i32_0 = arith.constant 0 : i32
    %c0_i32_1 = arith.constant 0 : i32
    return %arg1, %c0_i32, %c0_i32_0 : i32, i32, i32
  }
  func.func @transform_10(%arg0: i32, %arg1: i32) -> (i32, i32, i32) {
    %c0_i32 = arith.constant 0 : i32
    %c0_i32_0 = arith.constant 0 : i32
    %c0_i32_1 = arith.constant 0 : i32
    return %arg1, %c0_i32, %c0_i32_0 : i32, i32, i32
  }
  func.func @transform_11(%arg0: i32, %arg1: i32) -> (i32, i32, i32) {
    %c0_i32 = arith.constant 0 : i32
    %c0_i32_0 = arith.constant 0 : i32
    %c0_i32_1 = arith.constant 0 : i32
    return %arg1, %c0_i32, %c0_i32_0 : i32, i32, i32
  }
  func.func @transform_12(%arg0: i32, %arg1: i32) -> (i32, i32) {
    %c0_i32 = arith.constant 0 : i32
    %c0_i32_0 = arith.constant 0 : i32
    %c0_i32_1 = arith.constant 0 : i32
    return %c0_i32, %c0_i32_0 : i32, i32
  }
  func.func @transform_13(%arg0: i32, %arg1: i32) -> (i32, i32) {
    %c0_i32 = arith.constant 0 : i32
    %c0_i32_0 = arith.constant 0 : i32
    %c0_i32_1 = arith.constant 0 : i32
    return %c0_i32, %c0_i32_0 : i32, i32
  }
  func.func @transform_14(%arg0: i32, %arg1: i32) -> (i32, i32) {
    %c0_i32 = arith.constant 0 : i32
    %c0_i32_0 = arith.constant 0 : i32
    %c0_i32_1 = arith.constant 0 : i32
    return %c0_i32, %c0_i32_0 : i32, i32
  }
  func.func @transform_15(%arg0: i32, %arg1: i32) -> (i32, i32) {
    %c0_i32 = arith.constant 0 : i32
    %c0_i32_0 = arith.constant 0 : i32
    %c0_i32_1 = arith.constant 0 : i32
    return %c0_i32, %c0_i32_0 : i32, i32
  }
  func.func @transform_16(%arg0: i32, %arg1: i32) -> (i32, i32) {
    %c0_i32 = arith.constant 0 : i32
    %c0_i32_0 = arith.constant 0 : i32
    %c0_i32_1 = arith.constant 0 : i32
    return %c0_i32, %c0_i32_0 : i32, i32
  }
  func.func @transform_17(%arg0: i32, %arg1: i32) -> (i32, i32) {
    %c0_i32 = arith.constant 0 : i32
    %c0_i32_0 = arith.constant 0 : i32
    %c0_i32_1 = arith.constant 0 : i32
    return %c0_i32, %c0_i32_0 : i32, i32
  }
  func.func @transform_18(%arg0: i32, %arg1: i32) -> (i32, i32, i32) {
    %c0_i32 = arith.constant 0 : i32
    %c0_i32_0 = arith.constant 0 : i32
    %c0_i32_1 = arith.constant 0 : i32
    return %arg0, %c0_i32, %c0_i32_0 : i32, i32, i32
  }
}

</mosaic_0001>

<llo_original>
// kernel: _lambda_.1
$region0: #{_lambda_.1}
  #allocation0 [shape = 'u32[]', space=smem, size = 0x4, offset = 0x4, fixed_abs, tag = 'smem constant byte address 0x4 - core index']
  #allocation1 [shape = 'u32[144,128]{1,0:T(1,128)}', space=vmem, size = 0x12000, scoped, tag = 'internal scratch']
  #allocation2 [shape = 'f32[8,32]{1,0:T(8,128)}', space=vmem, size = 0x1000, scoped, tag = 'scratch operand']
  #allocation3 [shape = 'f32[8,8]{1,0:T(8,128)}', space=vmem, size = 0x1000, scoped, tag = 'scratch operand']
  %s0 = inlined_call_operand.vmem [shape: f32[2,8,1], index: 0, kind: input, shape index: {}]
  %s1 = inlined_call_operand.vmem [shape: f32[1,64], index: 1, kind: input, shape index: {}]
  %s2 = inlined_call_operand.vmem [shape: f32[1,64], index: 2, kind: input, shape index: {}, may-alias: {2,13,15}]
  %s3 = inlined_call_operand.hbm [shape: bf16[64,32], index: 3, kind: input, shape index: {}]
  %s4 = inlined_call_operand.vmem [shape: f32[1,32], index: 4, kind: input, shape index: {}]
  %s5 = inlined_call_operand.hbm [shape: bf16[6,32,96], index: 5, kind: input, shape index: {}]
  %s6 = inlined_call_operand.vmem [shape: f32[6,1,96], index: 6, kind: input, shape index: {}]
  %s7 = inlined_call_operand.hbm [shape: bf16[6,32,32], index: 7, kind: input, shape index: {}]
  %s8 = inlined_call_operand.vmem [shape: bf16[6,32,128], index: 8, kind: input, shape index: {}]
  %s9 = inlined_call_operand.vmem [shape: f32[6,1,128], index: 9, kind: input, shape index: {}]
  %s10 = inlined_call_operand.hbm [shape: bf16[6,128,32], index: 10, kind: input, shape index: {}]
  %s11 = inlined_call_operand.hbm [shape: f32[6,6,32], index: 11, kind: input, shape index: {}]
  %s12 = inlined_call_operand.hbm [shape: bf16[32,64], index: 12, kind: input, shape index: {}]
  %s13 = inlined_call_operand.vmem [shape: f32[1,64], index: 13, kind: input, shape index: {}, may-alias: {2,13,15}]
  %s14 = inlined_call_operand.hbm [shape: bf16[64,64], index: 14, kind: input, shape index: {}]
  %s15 = inlined_call_operand.vmem [shape: f32[1,64], index: 15, kind: input, shape index: {}, may-alias: {2,13,15}]
  %s16 = inlined_call_operand.hbm [shape: bf16[64,128], index: 16, kind: input, shape index: {}]
  %s17 = inlined_call_operand.vmem [shape: f32[1,128], index: 17, kind: input, shape index: {}]
  %s18 = inlined_call_operand.vmem [shape: f32[2,8,128], index: 18, kind: output, shape index: {}]
  %s19 = sld [smem:[#allocation0]]
  $region145: #{_lambda_.1} parent=0
    _
  %s21 = ssub.s32 1, %s19
  %s22 = scalar_select 0, %s21, %s19
  $region1: #{_lambda_.1} parent=0
    #allocation4 [shape = 'u8[16384]{0}', space=vmem, size = 0x4000, scoped, tag = 'input window, operand 3, single buffered']
    #allocation5 [shape = 's32[2]{0}', space=sflag, size = 0x8, scoped, tag = 'scoped memory for _lambda_.1']
    #allocation6 [shape = 'u8[16384]{0}', space=vmem, size = 0x4000, scoped, tag = 'input window, operand 5']
    #allocation7 [shape = 's32[2]{0}', space=sflag, size = 0x8, scoped, tag = 'scoped memory for _lambda_.1']
    #allocation8 [shape = 'u8[16384]{0}', space=vmem, size = 0x4000, scoped, tag = 'input window, operand 7']
    #allocation9 [shape = 'u8[65536]{0}', space=vmem, size = 0x10000, scoped, tag = 'input window, operand 10']
    #allocation10 [shape = 's32[2]{0}', space=sflag, size = 0x8, scoped, tag = 'scoped memory for _lambda_.1']
    #allocation11 [shape = 'u8[8192]{0}', space=vmem, size = 0x2000, scoped, tag = 'input window, operand 11']
    #allocation12 [shape = 'u8[8192]{0}', space=vmem, size = 0x2000, scoped, tag = 'input window, operand 12, single buffered']
    #allocation13 [shape = 's32[1]{0}', space=sflag, size = 0x4, scoped, tag = 'scoped memory for _lambda_.1']
    #allocation14 [shape = 'u8[16384]{0}', space=vmem, size = 0x4000, scoped, tag = 'input window, operand 14, single buffered']
    #allocation15 [shape = 'u8[16384]{0}', space=vmem, size = 0x4000, scoped, tag = 'input window, operand 16, single buffered']
    #allocation16 [shape = 's32[1]{0}', space=sflag, size = 0x4, scoped, tag = 'scoped memory for _lambda_.1']
    %23 = vsyncpa [#allocation5], 0
    %24 = vsyncpa [#allocation7], 0
    %s25 = scalar_lea.sflag [#allocation7], 1
    %26 = vsyncpa %s25, 0
    %27 = vsyncpa [#allocation10], 0
    %s28 = scalar_lea.sflag [#allocation10], 1
    %29 = vsyncpa %s28, 0
    %30 = vsyncpa [#allocation13], 0
    %31 = vsyncpa [#allocation16], 0
    loop: start=0, step=1, limit=14
    $region2: #{_lambda_.1} parent=1 // loop_pre_header
      _
    $region3: #{_lambda_.1} parent=1 // loop_header
      %s33 = sphi 0, %s37
      %p34 = scmp.ge.s32.totalorder %s33, 14
      %s40 = sphi 0, %s52
      %s41 = sphi 0, %s48
      %s42 = sphi 0, %s40
      %s43 = sphi 0, %s41
      %s44 = sphi 0, %s42
      %s45 = sphi 0, %s43
      %s55 = sphi 0, %s57
      %s58 = sphi 0, %s55
      %s59 = sphi 0, %s58
      %s75 = sphi 0, %s59
      %s79 = sphi 0, %s79
      %s81 = sphi 0, %s79
      %s82 = sphi 0, %s81
      %s96 = sphi 0, %s82
      %s100 = sphi 0, %s100
      %s102 = sphi 0, %s100
      %s103 = sphi 0, %s102
      %s117 = sphi 0, %s103
      %s121 = sphi 0, %s121
      %s123 = sphi 0, %s121
      %s124 = sphi 0, %s123
      %s138 = sphi 0, %s124
      %s142 = sphi 0, %s142
      %s144 = sphi 0, %s142
      %s145 = sphi 0, %s144
      %s159 = sphi 0, %s145
      %s165 = sphi 0, %s167
      %s168 = sphi 0, %s165
      %s169 = sphi 0, %s168
      %s185 = sphi 0, %s169
      %s191 = sphi 0, %s193
      %s194 = sphi 0, %s191
      %s195 = sphi 0, %s194
      %s211 = sphi 0, %s195
      %s217 = sphi 0, %s219
      %s220 = sphi 0, %s217
      %s221 = sphi 0, %s220
      %s237 = sphi 0, %s221
      %s243 = sphi 0, %s245
      %s246 = sphi 0, %s243
      %s247 = sphi 0, %s246
      %s263 = sphi 0, %s247
      %s269 = sphi 0, %s271
      %s272 = sphi 0, %s269
      %s273 = sphi 0, %s272
      %s289 = sphi 0, %s273
      %s295 = sphi 0, %s297
      %s298 = sphi 0, %s295
      %s299 = sphi 0, %s298
      %s315 = sphi 0, %s299
      %s321 = sphi 0, %s323
      %s324 = sphi 0, %s321
      %s325 = sphi 0, %s324
      %s341 = sphi 0, %s325
      %s345 = sphi 0, %s345
      %s347 = sphi 0, %s345
      %s348 = sphi 0, %s347
      %s362 = sphi 0, %s348
      %s366 = sphi 0, %s366
      %s368 = sphi 0, %s366
      %s369 = sphi 0, %s368
      %s383 = sphi 0, %s369
      %s387 = sphi 0, %s387
      %s389 = sphi 0, %s387
      %s390 = sphi 0, %s389
      %s404 = sphi 0, %s390
      %s408 = sphi 0, %s408
      %s410 = sphi 0, %s408
      %s411 = sphi 0, %s410
      %s425 = sphi 0, %s411
      %s429 = sphi 0, %s429
      %s431 = sphi 0, %s429
      %s432 = sphi 0, %s431
      %s446 = sphi 0, %s432
      %s450 = sphi 0, %s450
      %s452 = sphi 0, %s450
      %s453 = sphi 0, %s452
      %s467 = sphi 0, %s453
      %s473 = sphi 0, %s475
      %s476 = sphi 0, %s473
      %s477 = sphi 0, %s476
      %s493 = sphi 0, %s477
    $region4: #{_lambda_.1} parent=1 // loop_header_branch
      %36 = sbr.rel (%p34) target = $region8
    $region5: #{_lambda_.1} parent=1 // loop_body
      %s38 = ssub.s32 %s33, 1
      %s39 = ssub.s32 %s33, 2
      %s46 = sadd.s32 1, %s41
      %p47 = scmp.ge.s32.totalorder %s46, 6
      %s48 = scalar_select %p47, 0, %s46
      %s49 = sadd.s32 1, %s40
      %s50 = scalar_select %p47, %s49, %s40
      %p51 = scmp.ge.s32.totalorder %s50, 2
      %s52 = scalar_select %p51, 0, %s50
      %s53 = ssub.s32 %s40, %s52
      %p54 = scmp.eq.s32.totalorder %s53, 0
      %s56 = sadd.s32 %s55, 1
      %s57 = scalar_select %p54, %s55, %s56
      %p60 = pneg %p54
      %p61 = scmp.eq.s32.totalorder %s33, 11
      %p62 = por %p60, %p61
      %p63 = scmp.ne.s32.totalorder %s55, %s58
      %p64 = scmp.eq.s32.totalorder %s33, 0
      %p65 = por %p63, %p64
      %p66 = scmp.ne.s32.totalorder %s55, %s58
      %p67 = scmp.eq.s32.totalorder %s38, 11
      %p68 = por %p66, %p67
      %p69 = scmp.ne.s32.totalorder %s58, %s59
      %p70 = scmp.eq.s32.totalorder %s38, 0
      %p71 = por %p69, %p70
      %p72 = scmp.ne.s32.totalorder %s58, %s59
      %p73 = scmp.eq.s32.totalorder %s39, 11
      %p74 = por %p72, %p73
      %p76 = scmp.ne.s32.totalorder %s59, %s75
      %p77 = scmp.eq.s32.totalorder %s39, 0
      %p78 = por %p76, %p77
      %s80 = sadd.s32 %s79, 1
      %p83 = scmp.eq.s32.totalorder %s33, 11
      %p84 = scmp.ne.s32.totalorder %s79, %s81
      %p85 = scmp.eq.s32.totalorder %s33, 0
      %p86 = por %p84, %p85
      %p87 = scmp.ne.s32.totalorder %s79, %s81
      %p88 = scmp.eq.s32.totalorder %s38, 11
      %p89 = por %p87, %p88
      %p90 = scmp.ne.s32.totalorder %s81, %s82
      %p91 = scmp.eq.s32.totalorder %s38, 0
      %p92 = por %p90, %p91
      %p93 = scmp.ne.s32.totalorder %s81, %s82
      %p94 = scmp.eq.s32.totalorder %s39, 11
      %p95 = por %p93, %p94
      %p97 = scmp.ne.s32.totalorder %s82, %s96
      %p98 = scmp.eq.s32.totalorder %s39, 0
      %p99 = por %p97, %p98
      %s101 = sadd.s32 %s100, 1
      %p104 = scmp.eq.s32.totalorder %s33, 11
      %p105 = scmp.ne.s32.totalorder %s100, %s102
      %p106 = scmp.eq.s32.totalorder %s33, 0
      %p107 = por %p105, %p106
      %p108 = scmp.ne.s32.totalorder %s100, %s102
      %p109 = scmp.eq.s32.totalorder %s38, 11
      %p110 = por %p108, %p109
      %p111 = scmp.ne.s32.totalorder %s102, %s103
      %p112 = scmp.eq.s32.totalorder %s38, 0
      %p113 = por %p111, %p112
      %p114 = scmp.ne.s32.totalorder %s102, %s103
      %p115 = scmp.eq.s32.totalorder %s39, 11
      %p116 = por %p114, %p115
      %p118 = scmp.ne.s32.totalorder %s103, %s117
      %p119 = scmp.eq.s32.totalorder %s39, 0
      %p120 = por %p118, %p119
      %s122 = sadd.s32 %s121, 1
      %p125 = scmp.eq.s32.totalorder %s33, 11
      %p126 = scmp.ne.s32.totalorder %s121, %s123
      %p127 = scmp.eq.s32.totalorder %s33, 0
      %p128 = por %p126, %p127
      %p129 = scmp.ne.s32.totalorder %s121, %s123
      %p130 = scmp.eq.s32.totalorder %s38, 11
      %p131 = por %p129, %p130
      %p132 = scmp.ne.s32.totalorder %s123, %s124
      %p133 = scmp.eq.s32.totalorder %s38, 0
      %p134 = por %p132, %p133
      %p135 = scmp.ne.s32.totalorder %s123, %s124
      %p136 = scmp.eq.s32.totalorder %s39, 11
      %p137 = por %p135, %p136
      %p139 = scmp.ne.s32.totalorder %s124, %s138
      %p140 = scmp.eq.s32.totalorder %s39, 0
      %p141 = por %p139, %p140
      %s143 = sadd.s32 %s142, 1
      %p146 = scmp.eq.s32.totalorder %s33, 11
      %p147 = scmp.ne.s32.totalorder %s142, %s144
      %p148 = scmp.eq.s32.totalorder %s33, 0
      %p149 = por %p147, %p148
      %p150 = scmp.ne.s32.totalorder %s142, %s144
      %p151 = scmp.eq.s32.totalorder %s38, 11
      %p152 = por %p150, %p151
      %p153 = scmp.ne.s32.totalorder %s144, %s145
      %p154 = scmp.eq.s32.totalorder %s38, 0
      %p155 = por %p153, %p154
      %p156 = scmp.ne.s32.totalorder %s144, %s145
      %p157 = scmp.eq.s32.totalorder %s39, 11
      %p158 = por %p156, %p157
      %p160 = scmp.ne.s32.totalorder %s145, %s159
      %p161 = scmp.eq.s32.totalorder %s39, 0
      %p162 = por %p160, %p161
      %s163 = ssub.s32 %s41, %s48
      %p164 = scmp.eq.s32.totalorder %s163, 0
      %s166 = sadd.s32 %s165, 1
      %s167 = scalar_select %p164, %s165, %s166
      %p170 = pneg %p164
      %p171 = scmp.eq.s32.totalorder %s33, 11
      %p172 = por %p170, %p171
      %p173 = scmp.ne.s32.totalorder %s165, %s168
      %p174 = scmp.eq.s32.totalorder %s33, 0
      %p175 = por %p173, %p174
      %p176 = scmp.ne.s32.totalorder %s165, %s168
      %p177 = scmp.eq.s32.totalorder %s38, 11
      %p178 = por %p176, %p177
      %p179 = scmp.ne.s32.totalorder %s168, %s169
      %p180 = scmp.eq.s32.totalorder %s38, 0
      %p181 = por %p179, %p180
      %p182 = scmp.ne.s32.totalorder %s168, %s169
      %p183 = scmp.eq.s32.totalorder %s39, 11
      %p184 = por %p182, %p183
      %p186 = scmp.ne.s32.totalorder %s169, %s185
      %p187 = scmp.eq.s32.totalorder %s39, 0
      %p188 = por %p186, %p187
      %s189 = ssub.s32 %s41, %s48
      %p190 = scmp.eq.s32.totalorder %s189, 0
      %s192 = sadd.s32 %s191, 1
      %s193 = scalar_select %p190, %s191, %s192
      %p196 = pneg %p190
      %p197 = scmp.eq.s32.totalorder %s33, 11
      %p198 = por %p196, %p197
      %p199 = scmp.ne.s32.totalorder %s191, %s194
      %p200 = scmp.eq.s32.totalorder %s33, 0
      %p201 = por %p199, %p200
      %p202 = scmp.ne.s32.totalorder %s191, %s194
      %p203 = scmp.eq.s32.totalorder %s38, 11
      %p204 = por %p202, %p203
      %p205 = scmp.ne.s32.totalorder %s194, %s195
      %p206 = scmp.eq.s32.totalorder %s38, 0
      %p207 = por %p205, %p206
      %p208 = scmp.ne.s32.totalorder %s194, %s195
      %p209 = scmp.eq.s32.totalorder %s39, 11
      %p210 = por %p208, %p209
      %p212 = scmp.ne.s32.totalorder %s195, %s211
      %p213 = scmp.eq.s32.totalorder %s39, 0
      %p214 = por %p212, %p213
      %s215 = ssub.s32 %s41, %s48
      %p216 = scmp.eq.s32.totalorder %s215, 0
      %s218 = sadd.s32 %s217, 1
      %s219 = scalar_select %p216, %s217, %s218
      %p222 = pneg %p216
      %p223 = scmp.eq.s32.totalorder %s33, 11
      %p224 = por %p222, %p223
      %p225 = scmp.ne.s32.totalorder %s217, %s220
      %p226 = scmp.eq.s32.totalorder %s33, 0
      %p227 = por %p225, %p226
      %p228 = scmp.ne.s32.totalorder %s217, %s220
      %p229 = scmp.eq.s32.totalorder %s38, 11
      %p230 = por %p228, %p229
      %p231 = scmp.ne.s32.totalorder %s220, %s221
      %p232 = scmp.eq.s32.totalorder %s38, 0
      %p233 = por %p231, %p232
      %p234 = scmp.ne.s32.totalorder %s220, %s221
      %p235 = scmp.eq.s32.totalorder %s39, 11
      %p236 = por %p234, %p235
      %p238 = scmp.ne.s32.totalorder %s221, %s237
      %p239 = scmp.eq.s32.totalorder %s39, 0
      %p240 = por %p238, %p239
      %s241 = ssub.s32 %s41, %s48
      %p242 = scmp.eq.s32.totalorder %s241, 0
      %s244 = sadd.s32 %s243, 1
      %s245 = scalar_select %p242, %s243, %s244
      %p248 = pneg %p242
      %p249 = scmp.eq.s32.totalorder %s33, 11
      %p250 = por %p248, %p249
      %p251 = scmp.ne.s32.totalorder %s243, %s246
      %p252 = scmp.eq.s32.totalorder %s33, 0
      %p253 = por %p251, %p252
      %p254 = scmp.ne.s32.totalorder %s243, %s246
      %p255 = scmp.eq.s32.totalorder %s38, 11
      %p256 = por %p254, %p255
      %p257 = scmp.ne.s32.totalorder %s246, %s247
      %p258 = scmp.eq.s32.totalorder %s38, 0
      %p259 = por %p257, %p258
      %p260 = scmp.ne.s32.totalorder %s246, %s247
      %p261 = scmp.eq.s32.totalorder %s39, 11
      %p262 = por %p260, %p261
      %p264 = scmp.ne.s32.totalorder %s247, %s263
      %p265 = scmp.eq.s32.totalorder %s39, 0
      %p266 = por %p264, %p265
      %s267 = ssub.s32 %s41, %s48
      %p268 = scmp.eq.s32.totalorder %s267, 0
      %s270 = sadd.s32 %s269, 1
      %s271 = scalar_select %p268, %s269, %s270
      %p274 = pneg %p268
      %p275 = scmp.eq.s32.totalorder %s33, 11
      %p276 = por %p274, %p275
      %p277 = scmp.ne.s32.totalorder %s269, %s272
      %p278 = scmp.eq.s32.totalorder %s33, 0
      %p279 = por %p277, %p278
      %p280 = scmp.ne.s32.totalorder %s269, %s272
      %p281 = scmp.eq.s32.totalorder %s38, 11
      %p282 = por %p280, %p281
      %p283 = scmp.ne.s32.totalorder %s272, %s273
      %p284 = scmp.eq.s32.totalorder %s38, 0
      %p285 = por %p283, %p284
      %p286 = scmp.ne.s32.totalorder %s272, %s273
      %p287 = scmp.eq.s32.totalorder %s39, 11
      %p288 = por %p286, %p287
      %p290 = scmp.ne.s32.totalorder %s273, %s289
      %p291 = scmp.eq.s32.totalorder %s39, 0
      %p292 = por %p290, %p291
      %s293 = ssub.s32 %s41, %s48
      %p294 = scmp.eq.s32.totalorder %s293, 0
      %s296 = sadd.s32 %s295, 1
      %s297 = scalar_select %p294, %s295, %s296
      %p300 = pneg %p294
      %p301 = scmp.eq.s32.totalorder %s33, 11
      %p302 = por %p300, %p301
      %p303 = scmp.ne.s32.totalorder %s295, %s298
      %p304 = scmp.eq.s32.totalorder %s33, 0
      %p305 = por %p303, %p304
      %p306 = scmp.ne.s32.totalorder %s295, %s298
      %p307 = scmp.eq.s32.totalorder %s38, 11
      %p308 = por %p306, %p307
      %p309 = scmp.ne.s32.totalorder %s298, %s299
      %p310 = scmp.eq.s32.totalorder %s38, 0
      %p311 = por %p309, %p310
      %p312 = scmp.ne.s32.totalorder %s298, %s299
      %p313 = scmp.eq.s32.totalorder %s39, 11
      %p314 = por %p312, %p313
      %p316 = scmp.ne.s32.totalorder %s299, %s315
      %p317 = scmp.eq.s32.totalorder %s39, 0
      %p318 = por %p316, %p317
      %s319 = ssub.s32 %s41, %s48
      %p320 = scmp.eq.s32.totalorder %s319, 0
      %s322 = sadd.s32 %s321, 1
      %s323 = scalar_select %p320, %s321, %s322
      %p326 = pneg %p320
      %p327 = scmp.eq.s32.totalorder %s33, 11
      %p328 = por %p326, %p327
      %p329 = scmp.ne.s32.totalorder %s321, %s324
      %p330 = scmp.eq.s32.totalorder %s33, 0
      %p331 = por %p329, %p330
      %p332 = scmp.ne.s32.totalorder %s321, %s324
      %p333 = scmp.eq.s32.totalorder %s38, 11
      %p334 = por %p332, %p333
      %p335 = scmp.ne.s32.totalorder %s324, %s325
      %p336 = scmp.eq.s32.totalorder %s38, 0
      %p337 = por %p335, %p336
      %p338 = scmp.ne.s32.totalorder %s324, %s325
      %p339 = scmp.eq.s32.totalorder %s39, 11
      %p340 = por %p338, %p339
      %p342 = scmp.ne.s32.totalorder %s325, %s341
      %p343 = scmp.eq.s32.totalorder %s39, 0
      %p344 = por %p342, %p343
      %s346 = sadd.s32 %s345, 1
      %p349 = scmp.eq.s32.totalorder %s33, 11
      %p350 = scmp.ne.s32.totalorder %s345, %s347
      %p351 = scmp.eq.s32.totalorder %s33, 0
      %p352 = por %p350, %p351
      %p353 = scmp.ne.s32.totalorder %s345, %s347
      %p354 = scmp.eq.s32.totalorder %s38, 11
      %p355 = por %p353, %p354
      %p356 = scmp.ne.s32.totalorder %s347, %s348
      %p357 = scmp.eq.s32.totalorder %s38, 0
      %p358 = por %p356, %p357
      %p359 = scmp.ne.s32.totalorder %s347, %s348
      %p360 = scmp.eq.s32.totalorder %s39, 11
      %p361 = por %p359, %p360
      %p363 = scmp.ne.s32.totalorder %s348, %s362
      %p364 = scmp.eq.s32.totalorder %s39, 0
      %p365 = por %p363, %p364
      %s367 = sadd.s32 %s366, 1
      %p370 = scmp.eq.s32.totalorder %s33, 11
      %p371 = scmp.ne.s32.totalorder %s366, %s368
      %p372 = scmp.eq.s32.totalorder %s33, 0
      %p373 = por %p371, %p372
      %p374 = scmp.ne.s32.totalorder %s366, %s368
      %p375 = scmp.eq.s32.totalorder %s38, 11
      %p376 = por %p374, %p375
      %p377 = scmp.ne.s32.totalorder %s368, %s369
      %p378 = scmp.eq.s32.totalorder %s38, 0
      %p379 = por %p377, %p378
      %p380 = scmp.ne.s32.totalorder %s368, %s369
      %p381 = scmp.eq.s32.totalorder %s39, 11
      %p382 = por %p380, %p381
      %p384 = scmp.ne.s32.totalorder %s369, %s383
      %p385 = scmp.eq.s32.totalorder %s39, 0
      %p386 = por %p384, %p385
      %s388 = sadd.s32 %s387, 1
      %p391 = scmp.eq.s32.totalorder %s33, 11
      %p392 = scmp.ne.s32.totalorder %s387, %s389
      %p393 = scmp.eq.s32.totalorder %s33, 0
      %p394 = por %p392, %p393
      %p395 = scmp.ne.s32.totalorder %s387, %s389
      %p396 = scmp.eq.s32.totalorder %s38, 11
      %p397 = por %p395, %p396
      %p398 = scmp.ne.s32.totalorder %s389, %s390
      %p399 = scmp.eq.s32.totalorder %s38, 0
      %p400 = por %p398, %p399
      %p401 = scmp.ne.s32.totalorder %s389, %s390
      %p402 = scmp.eq.s32.totalorder %s39, 11
      %p403 = por %p401, %p402
      %p405 = scmp.ne.s32.totalorder %s390, %s404
      %p406 = scmp.eq.s32.totalorder %s39, 0
      %p407 = por %p405, %p406
      %s409 = sadd.s32 %s408, 1
      %p412 = scmp.eq.s32.totalorder %s33, 11
      %p413 = scmp.ne.s32.totalorder %s408, %s410
      %p414 = scmp.eq.s32.totalorder %s33, 0
      %p415 = por %p413, %p414
      %p416 = scmp.ne.s32.totalorder %s408, %s410
      %p417 = scmp.eq.s32.totalorder %s38, 11
      %p418 = por %p416, %p417
      %p419 = scmp.ne.s32.totalorder %s410, %s411
      %p420 = scmp.eq.s32.totalorder %s38, 0
      %p421 = por %p419, %p420
      %p422 = scmp.ne.s32.totalorder %s410, %s411
      %p423 = scmp.eq.s32.totalorder %s39, 11
      %p424 = por %p422, %p423
      %p426 = scmp.ne.s32.totalorder %s411, %s425
      %p427 = scmp.eq.s32.totalorder %s39, 0
      %p428 = por %p426, %p427
      %s430 = sadd.s32 %s429, 1
      %p433 = scmp.eq.s32.totalorder %s33, 11
      %p434 = scmp.ne.s32.totalorder %s429, %s431
      %p435 = scmp.eq.s32.totalorder %s33, 0
      %p436 = por %p434, %p435
      %p437 = scmp.ne.s32.totalorder %s429, %s431
      %p438 = scmp.eq.s32.totalorder %s38, 11
      %p439 = por %p437, %p438
      %p440 = scmp.ne.s32.totalorder %s431, %s432
      %p441 = scmp.eq.s32.totalorder %s38, 0
      %p442 = por %p440, %p441
      %p443 = scmp.ne.s32.totalorder %s431, %s432
      %p444 = scmp.eq.s32.totalorder %s39, 11
      %p445 = por %p443, %p444
      %p447 = scmp.ne.s32.totalorder %s432, %s446
      %p448 = scmp.eq.s32.totalorder %s39, 0
      %p449 = por %p447, %p448
      %s451 = sadd.s32 %s450, 1
      %p454 = scmp.eq.s32.totalorder %s33, 11
      %p455 = scmp.ne.s32.totalorder %s450, %s452
      %p456 = scmp.eq.s32.totalorder %s33, 0
      %p457 = por %p455, %p456
      %p458 = scmp.ne.s32.totalorder %s450, %s452
      %p459 = scmp.eq.s32.totalorder %s38, 11
      %p460 = por %p458, %p459
      %p461 = scmp.ne.s32.totalorder %s452, %s453
      %p462 = scmp.eq.s32.totalorder %s38, 0
      %p463 = por %p461, %p462
      %p464 = scmp.ne.s32.totalorder %s452, %s453
      %p465 = scmp.eq.s32.totalorder %s39, 11
      %p466 = por %p464, %p465
      %p468 = scmp.ne.s32.totalorder %s453, %s467
      %p469 = scmp.eq.s32.totalorder %s39, 0
      %p470 = por %p468, %p469
      %s471 = ssub.s32 %s40, %s52
      %p472 = scmp.eq.s32.totalorder %s471, 0
      %s474 = sadd.s32 %s473, 1
      %s475 = scalar_select %p472, %s473, %s474
      %p478 = pneg %p472
      %p479 = scmp.eq.s32.totalorder %s33, 11
      %p480 = por %p478, %p479
      %p481 = scmp.ne.s32.totalorder %s473, %s476
      %p482 = scmp.eq.s32.totalorder %s33, 0
      %p483 = por %p481, %p482
      %p484 = scmp.ne.s32.totalorder %s473, %s476
      %p485 = scmp.eq.s32.totalorder %s38, 11
      %p486 = por %p484, %p485
      %p487 = scmp.ne.s32.totalorder %s476, %s477
      %p488 = scmp.eq.s32.totalorder %s38, 0
      %p489 = por %p487, %p488
      %p490 = scmp.ne.s32.totalorder %s476, %s477
      %p491 = scmp.eq.s32.totalorder %s39, 11
      %p492 = por %p490, %p491
      %p494 = scmp.ne.s32.totalorder %s477, %s493
      %p495 = scmp.eq.s32.totalorder %s39, 0
      %p496 = por %p494, %p495
      %p497 = scmp.le.s32.totalorder 1, %s33
      %p498 = scmp.lt.s32.totalorder %s33, 13
      %p499 = pnand %p497, %p498
      %p500 = pneg %p499
      // Predicated region
      $region9: #{_lambda_.1} parent=5 // pred_check
        _
      $region10: #{_lambda_.1} parent=5 // pred_check_branch
        %502 = sbr.rel (%p499) target = $region12
      $region11: #{_lambda_.1} parent=5 // pred_region
        %s503 = ssub.s32 %s33, 1
        // Predicated region
        $region13: #{_lambda_.1} parent=11 // pred_check
          %p504 = pneg %p92
        $region14: #{_lambda_.1} parent=11 // pred_check_branch
          %506 = sbr.rel (%p504) target = $region16
        $region15: #{_lambda_.1} parent=11 // pred_region
          _
        $region16: #{_lambda_.1} parent=11 // pred_fallthru
          _
        // Predicated region
        $region17: #{_lambda_.1} parent=11 // pred_check
          %p507 = pneg %p113
        $region18: #{_lambda_.1} parent=11 // pred_check_branch
          %509 = sbr.rel (%p507) target = $region20
        $region19: #{_lambda_.1} parent=11 // pred_region
          _
        $region20: #{_lambda_.1} parent=11 // pred_fallthru
          _
        // Predicated region
        $region21: #{_lambda_.1} parent=11 // pred_check
          %p510 = pneg %p134
        $region22: #{_lambda_.1} parent=11 // pred_check_branch
          %512 = sbr.rel (%p510) target = $region24
        $region23: #{_lambda_.1} parent=11 // pred_region
          %s514 = ssub.s32 512, 512
          %515 = vsyncadd [#allocation5], %s514
          %s516 = sshll.u32 [#allocation4], 4
          %s517 = int_to_ptr.vmem [resolvable:$true] %s516
          %522 = dma.hbm_to_vmem [thread:$0]  %s3, 512, %s517, [#allocation5], 64, 64, 4
        $region24: #{_lambda_.1} parent=11 // pred_fallthru
          _
        // Predicated region
        $region25: #{_lambda_.1} parent=11 // pred_check
          %p523 = pneg %p155
        $region26: #{_lambda_.1} parent=11 // pred_check_branch
          %525 = sbr.rel (%p523) target = $region28
        $region27: #{_lambda_.1} parent=11 // pred_region
          _
        $region28: #{_lambda_.1} parent=11 // pred_fallthru
          _
        // Predicated region
        $region29: #{_lambda_.1} parent=11 // pred_check
          %p526 = pneg %p358
        $region30: #{_lambda_.1} parent=11 // pred_check_branch
          %528 = sbr.rel (%p526) target = $region32
        $region31: #{_lambda_.1} parent=11 // pred_region
          %s530 = ssub.s32 256, 256
          %531 = vsyncadd [#allocation13], %s530
          %s532 = sshll.u32 [#allocation12], 4
          %s533 = int_to_ptr.vmem [resolvable:$true] %s532
          %538 = dma.hbm_to_vmem [thread:$0]  %s12, 256, %s533, [#allocation13], 64, 64, 4
        $region32: #{_lambda_.1} parent=11 // pred_fallthru
          _
        // Predicated region
        $region33: #{_lambda_.1} parent=11 // pred_check
          %p539 = pneg %p379
        $region34: #{_lambda_.1} parent=11 // pred_check_branch
          %541 = sbr.rel (%p539) target = $region36
        $region35: #{_lambda_.1} parent=11 // pred_region
          _
        $region36: #{_lambda_.1} parent=11 // pred_fallthru
          _
        // Predicated region
        $region37: #{_lambda_.1} parent=11 // pred_check
          %p542 = pneg %p400
        $region38: #{_lambda_.1} parent=11 // pred_check_branch
          %544 = sbr.rel (%p542) target = $region40
        $region39: #{_lambda_.1} parent=11 // pred_region
          %s546 = ssub.s32 512, 512
          %547 = vsyncadd [#allocation13], %s546
          %s548 = sshll.u32 [#allocation14], 4
          %s549 = int_to_ptr.vmem [resolvable:$true] %s548
          %554 = dma.hbm_to_vmem [thread:$0]  %s14, 512, %s549, [#allocation13], 64, 64, 4
        $region40: #{_lambda_.1} parent=11 // pred_fallthru
          _
        // Predicated region
        $region41: #{_lambda_.1} parent=11 // pred_check
          %p555 = pneg %p421
        $region42: #{_lambda_.1} parent=11 // pred_check_branch
          %557 = sbr.rel (%p555) target = $region44
        $region43: #{_lambda_.1} parent=11 // pred_region
          _
        $region44: #{_lambda_.1} parent=11 // pred_fallthru
          _
        // Predicated region
        $region45: #{_lambda_.1} parent=11 // pred_check
          %p558 = pneg %p442
        $region46: #{_lambda_.1} parent=11 // pred_check_branch
          %560 = sbr.rel (%p558) target = $region48
        $region47: #{_lambda_.1} parent=11 // pred_region
          %s562 = ssub.s32 512, 512
          %563 = vsyncadd [#allocation16], %s562
          %s564 = sshll.u32 [#allocation15], 4
          %s565 = int_to_ptr.vmem [resolvable:$true] %s564
          %570 = dma.hbm_to_vmem [thread:$0]  %s16, 512, %s565, [#allocation16], 64, 64, 4
        $region48: #{_lambda_.1} parent=11 // pred_fallthru
          _
        // Predicated region
        $region49: #{_lambda_.1} parent=11 // pred_check
          %p571 = pneg %p463
        $region50: #{_lambda_.1} parent=11 // pred_check_branch
          %573 = sbr.rel (%p571) target = $region52
        $region51: #{_lambda_.1} parent=11 // pred_region
          _
        $region52: #{_lambda_.1} parent=11 // pred_fallthru
          _
      $region12: #{_lambda_.1} parent=5 // pred_fallthru
        _
      %p574 = scmp.lt.s32.totalorder %s33, 12
      // Predicated region
      $region53: #{_lambda_.1} parent=5 // pred_check
        %p575 = pneg %p574
      $region54: #{_lambda_.1} parent=5 // pred_check_branch
        %577 = sbr.rel (%p575) target = $region56
      $region55: #{_lambda_.1} parent=5 // pred_region
        // Predicated region
        $region57: #{_lambda_.1} parent=55 // pred_check
          %p578 = pneg %p65
        $region58: #{_lambda_.1} parent=55 // pred_check_branch
          %580 = sbr.rel (%p578) target = $region60
        $region59: #{_lambda_.1} parent=55 // pred_region
          %p581 = scmp.lt.s32.totalorder %s40, 1
          %s582 = scalar_select %p581, %s40, 1
          %s583 = smul.addr %s582, 8
          %s584 = scalar_lea.vmem %s0, %s583
        $region60: #{_lambda_.1} parent=55 // pred_fallthru
          _
        // Predicated region
        $region61: #{_lambda_.1} parent=55 // pred_check
          %p585 = pneg %p175
        $region62: #{_lambda_.1} parent=55 // pred_check_branch
          %587 = sbr.rel (%p585) target = $region64
        $region63: #{_lambda_.1} parent=55 // pred_region
          %s588 = sand.u32 %s33, 1
          %s589 = scalar_lea.sflag [#allocation7], %s588
          %s590 = sand.u32 %s165, 1
          %s591 = smul.addr %s590, 16
          %s592 = scalar_lea.vmem [#allocation6], %s591
          %s594 = ssub.s32 256, 256
          %595 = vsyncadd %s589, %s594
          %s596 = smul.addr %s41, 4
          %s597 = smul.addr %s596, 64
          %s598 = scalar_lea.hbm %s5, %s597
          %s599 = sshll.u32 %s592, 4
          %s600 = int_to_ptr.vmem [resolvable:$true] %s599
          %605 = dma.hbm_to_vmem [thread:$0]  %s598, 256, %s600, %s589, 64, 64, 4
        $region64: #{_lambda_.1} parent=55 // pred_fallthru
          _
        // Predicated region
        $region65: #{_lambda_.1} parent=55 // pred_check
          %p606 = pneg %p201
        $region66: #{_lambda_.1} parent=55 // pred_check_branch
          %608 = sbr.rel (%p606) target = $region68
        $region67: #{_lambda_.1} parent=55 // pred_region
          %p609 = scmp.lt.s32.totalorder %s41, 5
          %s610 = scalar_select %p609, %s41, 5
          %s611 = scalar_lea.vmem %s6, %s610
        $region68: #{_lambda_.1} parent=55 // pred_fallthru
          _
        // Predicated region
        $region69: #{_lambda_.1} parent=55 // pred_check
          %p612 = pneg %p227
        $region70: #{_lambda_.1} parent=55 // pred_check_branch
          %614 = sbr.rel (%p612) target = $region72
        $region71: #{_lambda_.1} parent=55 // pred_region
          %s615 = sand.u32 %s33, 1
          %s616 = scalar_lea.sflag [#allocation7], %s615
          %s617 = sand.u32 %s217, 1
          %s618 = smul.addr %s617, 16
          %s619 = scalar_lea.vmem [#allocation8], %s618
          %s621 = ssub.s32 256, 256
          %622 = vsyncadd %s616, %s621
          %s623 = smul.addr %s41, 4
          %s624 = smul.addr %s623, 64
          %s625 = scalar_lea.hbm %s7, %s624
          %s626 = sshll.u32 %s619, 4
          %s627 = int_to_ptr.vmem [resolvable:$true] %s626
          %632 = dma.hbm_to_vmem [thread:$0]  %s625, 256, %s627, %s616, 64, 64, 4
        $region72: #{_lambda_.1} parent=55 // pred_fallthru
          _
        // Predicated region
        $region73: #{_lambda_.1} parent=55 // pred_check
          %p633 = pneg %p253
        $region74: #{_lambda_.1} parent=55 // pred_check_branch
          %635 = sbr.rel (%p633) target = $region76
        $region75: #{_lambda_.1} parent=55 // pred_region
          %p636 = scmp.lt.s32.totalorder %s41, 5
          %s637 = scalar_select %p636, %s41, 5
          %s638 = smul.addr %s637, 4
          %s639 = smul.addr %s638, 4
          %s640 = scalar_lea.vmem %s8, %s639
        $region76: #{_lambda_.1} parent=55 // pred_fallthru
          _
        // Predicated region
        $region77: #{_lambda_.1} parent=55 // pred_check
          %p641 = pneg %p279
        $region78: #{_lambda_.1} parent=55 // pred_check_branch
          %643 = sbr.rel (%p641) target = $region80
        $region79: #{_lambda_.1} parent=55 // pred_region
          %p644 = scmp.lt.s32.totalorder %s41, 5
          %s645 = scalar_select %p644, %s41, 5
          %s646 = scalar_lea.vmem %s9, %s645
        $region80: #{_lambda_.1} parent=55 // pred_fallthru
          _
        // Predicated region
        $region81: #{_lambda_.1} parent=55 // pred_check
          %p647 = pneg %p305
        $region82: #{_lambda_.1} parent=55 // pred_check_branch
          %649 = sbr.rel (%p647) target = $region84
        $region83: #{_lambda_.1} parent=55 // pred_region
          %s650 = sand.u32 %s33, 1
          %s651 = scalar_lea.sflag [#allocation10], %s650
          %s652 = sand.u32 %s295, 1
          %s653 = smul.addr %s652, 64
          %s654 = scalar_lea.vmem [#allocation9], %s653
          %s656 = ssub.s32 1024, 1024
          %657 = vsyncadd %s651, %s656
          %s658 = smul.addr %s41, 16
          %s659 = smul.addr %s658, 64
          %s660 = scalar_lea.hbm %s10, %s659
          %s661 = sshll.u32 %s654, 4
          %s662 = int_to_ptr.vmem [resolvable:$true] %s661
          %667 = dma.hbm_to_vmem [thread:$0]  %s660, 1024, %s662, %s651, 64, 64, 4
        $region84: #{_lambda_.1} parent=55 // pred_fallthru
          _
        // Predicated region
        $region85: #{_lambda_.1} parent=55 // pred_check
          %p668 = pneg %p331
        $region86: #{_lambda_.1} parent=55 // pred_check_branch
          %670 = sbr.rel (%p668) target = $region88
        $region87: #{_lambda_.1} parent=55 // pred_region
          %s671 = sand.u32 %s33, 1
          %s672 = scalar_lea.sflag [#allocation10], %s671
          %s673 = sand.u32 %s321, 1
          %s674 = smul.addr %s673, 8
          %s675 = scalar_lea.vmem [#allocation11], %s674
          %s677 = ssub.s32 128, 128
          %678 = vsyncadd %s672, %s677
          %s679 = smul.addr %s41, 128
          %s680 = scalar_lea.hbm %s11, %s679
          %s682 = sshll.u32 %s675, 4
          %s683 = int_to_ptr.vmem [resolvable:$true] %s682
          %685 = dma.hbm_to_vmem [thread:$0]  %s680, 128, %s683, %s672
        $region88: #{_lambda_.1} parent=55 // pred_fallthru
          _
      $region56: #{_lambda_.1} parent=5 // pred_fallthru
        _
      %p686 = scmp.le.s32.totalorder 1, %s33
      %p687 = scmp.lt.s32.totalorder %s33, 13
      %p688 = pnand %p686, %p687
      %p689 = pneg %p688
      // Predicated region
      $region89: #{_lambda_.1} parent=5 // pred_check
        _
      $region90: #{_lambda_.1} parent=5 // pred_check_branch
        %691 = sbr.rel (%p688) target = $region92
      $region91: #{_lambda_.1} parent=5 // pred_region
        %s692 = ssub.s32 %s33, 1
        // Predicated region
        $region93: #{_lambda_.1} parent=91 // pred_check
          %p693 = pneg %p134
        $region94: #{_lambda_.1} parent=91 // pred_check_branch
          %695 = sbr.rel (%p693) target = $region96
        $region95: #{_lambda_.1} parent=91 // pred_region
          %696 = dma.done [#allocation5], 512
        $region96: #{_lambda_.1} parent=91 // pred_fallthru
          _
        %s697 = sand.u32 %s38, 1
        %s698 = scalar_lea.sflag [#allocation7], %s697
        %s699 = sand.u32 %s168, 1
        %s700 = smul.addr %s699, 16
        %s701 = scalar_lea.vmem [#allocation6], %s700
        // Predicated region
        $region97: #{_lambda_.1} parent=91 // pred_check
          %p702 = pneg %p181
        $region98: #{_lambda_.1} parent=91 // pred_check_branch
          %704 = sbr.rel (%p702) target = $region100
        $region99: #{_lambda_.1} parent=91 // pred_region
          %705 = dma.done %s698, 256
        $region100: #{_lambda_.1} parent=91 // pred_fallthru
          _
        %s706 = sand.u32 %s38, 1
        %s707 = scalar_lea.sflag [#allocation7], %s706
        %s708 = sand.u32 %s220, 1
        %s709 = smul.addr %s708, 16
        %s710 = scalar_lea.vmem [#allocation8], %s709
        // Predicated region
        $region101: #{_lambda_.1} parent=91 // pred_check
          %p711 = pneg %p233
        $region102: #{_lambda_.1} parent=91 // pred_check_branch
          %713 = sbr.rel (%p711) target = $region104
        $region103: #{_lambda_.1} parent=91 // pred_region
          %714 = dma.done %s707, 256
        $region104: #{_lambda_.1} parent=91 // pred_fallthru
          _
        %s715 = sand.u32 %s38, 1
        %s716 = scalar_lea.sflag [#allocation10], %s715
        %s717 = sand.u32 %s298, 1
        %s718 = smul.addr %s717, 64
        %s719 = scalar_lea.vmem [#allocation9], %s718
        // Predicated region
        $region105: #{_lambda_.1} parent=91 // pred_check
          %p720 = pneg %p311
        $region106: #{_lambda_.1} parent=91 // pred_check_branch
          %722 = sbr.rel (%p720) target = $region108
        $region107: #{_lambda_.1} parent=91 // pred_region
          %723 = dma.done %s716, 1024
        $region108: #{_lambda_.1} parent=91 // pred_fallthru
          _
        %s724 = sand.u32 %s38, 1
        %s725 = scalar_lea.sflag [#allocation10], %s724
        %s726 = sand.u32 %s324, 1
        %s727 = smul.addr %s726, 8
        %s728 = scalar_lea.vmem [#allocation11], %s727
        // Predicated region
        $region109: #{_lambda_.1} parent=91 // pred_check
          %p729 = pneg %p337
        $region110: #{_lambda_.1} parent=91 // pred_check_branch
          %731 = sbr.rel (%p729) target = $region112
        $region111: #{_lambda_.1} parent=91 // pred_region
          %732 = dma.done %s725, 128
        $region112: #{_lambda_.1} parent=91 // pred_fallthru
          _
        // Predicated region
        $region113: #{_lambda_.1} parent=91 // pred_check
          %p733 = pneg %p358
        $region114: #{_lambda_.1} parent=91 // pred_check_branch
          %735 = sbr.rel (%p733) target = $region116
        $region115: #{_lambda_.1} parent=91 // pred_region
          %736 = dma.done [#allocation13], 256
        $region116: #{_lambda_.1} parent=91 // pred_fallthru
          _
        // Predicated region
        $region117: #{_lambda_.1} parent=91 // pred_check
          %p737 = pneg %p400
        $region118: #{_lambda_.1} parent=91 // pred_check_branch
          %739 = sbr.rel (%p737) target = $region120
        $region119: #{_lambda_.1} parent=91 // pred_region
          %740 = dma.done [#allocation13], 512
        $region120: #{_lambda_.1} parent=91 // pred_fallthru
          _
        // Predicated region
        $region121: #{_lambda_.1} parent=91 // pred_check
          %p741 = pneg %p442
        $region122: #{_lambda_.1} parent=91 // pred_check_branch
          %743 = sbr.rel (%p741) target = $region124
        $region123: #{_lambda_.1} parent=91 // pred_region
          %744 = dma.done [#allocation16], 512
        $region124: #{_lambda_.1} parent=91 // pred_fallthru
          _
        %p745 = scmp.lt.s32.totalorder %s42, 1
        %s746 = scalar_select %p745, %s42, 1
        %s747 = smul.addr %s746, 8
        %s748 = scalar_lea.vmem %s0, %s747
        %p749 = pneg %p71
        %p750 = pneg %p68
        %p751 = pneg %p92
        %p752 = pneg %p89
        %p753 = pneg %p113
        %p754 = pneg %p110
        %p755 = pneg %p134
        %p756 = pneg %p131
        %p757 = pneg %p155
        %p758 = pneg %p152
        %s759 = sand.u32 %s38, 1
        %s760 = scalar_lea.sflag [#allocation7], %s759
        %s761 = sand.u32 %s168, 1
        %s762 = smul.addr %s761, 16
        %s763 = scalar_lea.vmem [#allocation6], %s762
        %p764 = pneg %p181
        %p765 = pneg %p178
        %p766 = scmp.lt.s32.totalorder %s43, 5
        %s767 = scalar_select %p766, %s43, 5
        %s768 = scalar_lea.vmem %s6, %s767
        %p769 = pneg %p207
        %p770 = pneg %p204
        %s771 = sand.u32 %s38, 1
        %s772 = scalar_lea.sflag [#allocation7], %s771
        %s773 = sand.u32 %s220, 1
        %s774 = smul.addr %s773, 16
        %s775 = scalar_lea.vmem [#allocation8], %s774
        %p776 = pneg %p233
        %p777 = pneg %p230
        %p778 = scmp.lt.s32.totalorder %s43, 5
        %s779 = scalar_select %p778, %s43, 5
        %s780 = smul.addr %s779, 4
        %s781 = smul.addr %s780, 4
        %s782 = scalar_lea.vmem %s8, %s781
        %p783 = pneg %p259
        %p784 = pneg %p256
        %p785 = scmp.lt.s32.totalorder %s43, 5
        %s786 = scalar_select %p785, %s43, 5
        %s787 = scalar_lea.vmem %s9, %s786
        %p788 = pneg %p285
        %p789 = pneg %p282
        %s790 = sand.u32 %s38, 1
        %s791 = scalar_lea.sflag [#allocation10], %s790
        %s792 = sand.u32 %s298, 1
        %s793 = smul.addr %s792, 64
        %s794 = scalar_lea.vmem [#allocation9], %s793
        %p795 = pneg %p311
        %p796 = pneg %p308
        %s797 = sand.u32 %s38, 1
        %s798 = scalar_lea.sflag [#allocation10], %s797
        %s799 = sand.u32 %s324, 1
        %s800 = smul.addr %s799, 8
        %s801 = scalar_lea.vmem [#allocation11], %s800
        %p802 = pneg %p337
        %p803 = pneg %p334
        %p804 = pneg %p358
        %p805 = pneg %p355
        %p806 = pneg %p379
        %p807 = pneg %p376
        %p808 = pneg %p400
        %p809 = pneg %p397
        %p810 = pneg %p421
        %p811 = pneg %p418
        %p812 = pneg %p442
        %p813 = pneg %p439
        %p814 = pneg %p463
        %p815 = pneg %p460
        %p816 = pneg %p489
        %p817 = pneg %p486
        %p818 = scmp.lt.s32.totalorder %s42, 1
        %s819 = scalar_select %p818, %s42, 1
        %s820 = smul.addr %s819, 8
        %s821 = scalar_lea.vmem %s18, %s820
        %p822 = scmp.lt.s32.totalorder %s42, 1
        %s823 = scalar_select %p822, %s42, 1
        %s824 = smul.addr %s823, 8
        %s825 = scalar_lea.vmem %s0, %s824
        %p826 = scmp.lt.s32.totalorder %s43, 5
        %s827 = scalar_select %p826, %s43, 5
        %s828 = scalar_lea.vmem %s6, %s827
        %p829 = scmp.lt.s32.totalorder %s43, 5
        %s830 = scalar_select %p829, %s43, 5
        %s831 = smul.addr %s830, 4
        %s832 = smul.addr %s831, 4
        %s833 = scalar_lea.vmem %s8, %s832
        %p834 = scmp.lt.s32.totalorder %s43, 5
        %s835 = scalar_select %p834, %s43, 5
        %s836 = scalar_lea.vmem %s9, %s835
        %p837 = scmp.lt.s32.totalorder %s42, 1
        %s838 = scalar_select %p837, %s42, 1
        %s839 = smul.addr %s838, 8
        %s840 = scalar_lea.vmem %s18, %s839
        %p842 = scmp.eq.s32.totalorder %s43, 0
        // Predicated region
        $region125: #{_lambda_.1} parent=91 // pred_check
          %p843 = pneg %p842
        $region126: #{_lambda_.1} parent=91 // pred_check_branch
          %845 = sbr.rel (%p843) target = $region128
        $region127: #{_lambda_.1} parent=91 // pred_region
          %v846 = vlaneseq
          %v847 = vshrl.u32 %v846, 7
          %v848 = vlaneseq
          %v849 = vand.u32 %v848, 127
          %vm850 = vcmp.le.s32.totalorder %v849, %v847
          %v851 = vsel %vm850, 0.0, -1e+30
          %vm852 = vcmask 64512
          %853 = vst.msk [vmem:[#allocation3] sm:$0xff] %vm852, %v851
          %v854 = vld [vmem:[%s825] sm:$0xff]
          %v855 = vld [vmem:[%s1] sm:$0x1]
          %857 = vset.pattern.permute.xlu0 0
          %858 = vperm.xlu0 %857, %v854
          %v859 = vpop.permute.xlu0 %858
          %v862 = vlaneseq
          %v863 = vshrl.u32 %v862, 7
          %v864 = vsub.s32 0, %v863
          %v865 = vrot.slane %v855, %v864
          %v867 = vmul.f32 %v859, %v865
          %v868 = vld [vmem:[%s2] sm:$0x1]
          %v870 = vlaneseq
          %v871 = vshrl.u32 %v870, 7
          %v872 = vsub.s32 0, %v871
          %v873 = vrot.slane %v868, %v872
          %v875 = vadd.f32 %v867, %v873
          %v876 = vmax.f32 %v875, 0.0
          %v877 = vpack.c.bf16 %v876, %v876
          %v878 = vld [vmem:[#allocation4] sm:$0xf]
          %v879 = vld [vmem:[#allocation4 + $0x4] sm:$0xf]
          %v880 = vld [vmem:[#allocation4 + $0x8] sm:$0xf]
          %v881 = vld [vmem:[#allocation4 + $0xc] sm:$0xf]
          %v882 = vld [vmem:[#allocation4 + $0x10] sm:$0xf]
          %v883 = vld [vmem:[#allocation4 + $0x14] sm:$0xf]
          %v884 = vld [vmem:[#allocation4 + $0x18] sm:$0xf]
          %v885 = vld [vmem:[#allocation4 + $0x1c] sm:$0xf]
          %v886 = vld [vmem:[%s4] sm:$0x1]
          %v888 = vlaneseq
          %v889 = vshrl.u32 %v888, 7
          %v890 = vsub.s32 0, %v889
          %v891 = vrot.slane %v886, %v890
          %v901 = vunpack.c.l.b16 %v878
          %v902 = vunpack.c.l.b16 %v879
          %v903 = vunpack.c.l.b16 %v880
          %v904 = vunpack.c.l.b16 %v881
          %v905 = vunpack.c.l.b16 %v882
          %v906 = vunpack.c.l.b16 %v883
          %v907 = vunpack.c.l.b16 %v884
          %v908 = vunpack.c.l.b16 %v885
          %v909 = vpack.c.b16 %v902, %v901
          %v910 = vpack.c.b16 %v904, %v903
          %v911 = vpack.c.b16 %v906, %v905
          %v912 = vpack.c.b16 %v908, %v907
          %vm917 = vcmask 523264
          %v919 = vsel %vm917, %v877, 0
          %921 = vmatprep.subr.bf16.mxu0 0
          %922 = vmatpush1.bf16.msra.mxu0 %v909
          %923 = vmatprep.subr.bf16.mxu0 0
          %924 = vmatpush1.bf16.msra.mxu0 %v910
          %925 = vmatprep.subr.bf16.mxu0 0
          %926 = vmatpush1.bf16.msra.mxu0 %v911
          %927 = vmatprep.subr.bf16.mxu0 0
          %928 = vmatpush1.bf16.msra.mxu0 %v912
          %929 = vmatprep.subr.bf16.mxu0 0
          %930 = vmatpush1.bf16.msra.mxu0 0
          %931 = vmatprep.subr.bf16.mxu0 0
          %932 = vmatpush1.bf16.msra.mxu0 0
          %933 = vmatprep.subr.bf16.mxu0 0
          %934 = vmatpush1.bf16.msra.mxu0 0
          %935 = vmatprep.subr.bf16.mxu0 0
          %936 = vmatpush1.bf16.msra.mxu0 0
          %937 = vmatprep.subr.bf16.mxu0 0
          %938 = vmatpush1.bf16.msra.mxu0 0
          %939 = vmatprep.subr.bf16.mxu0 0
          %940 = vmatpush1.bf16.msra.mxu0 0
          %941 = vmatprep.subr.bf16.mxu0 0
          %942 = vmatpush1.bf16.msra.mxu0 0
          %943 = vmatprep.subr.bf16.mxu0 0
          %944 = vmatpush1.bf16.msra.mxu0 0
          %945 = vmatprep.subr.bf16.mxu0 0
          %946 = vmatpush1.bf16.msra.mxu0 0
          %947 = vmatprep.subr.bf16.mxu0 0
          %948 = vmatpush1.bf16.msra.mxu0 0
          %949 = vmatprep.subr.bf16.mxu0 0
          %950 = vmatpush1.bf16.msra.mxu0 0
          %951 = vmatprep.subr.bf16.mxu0 0
          %952 = vmatpush1.bf16.msra.mxu0 0
          %953 = vmatprep.mubr.bf16.mxu0 0
          %954 = vmatmul.mubr.bf16.gmra.mrb[0].mxu0 %v919
          %v955 = vpop.f32.mrb[0].mxu0
          %v956 = vadd.f32 %v891, %v955
          %v957 = vpop.f32.mrb[0].mxu0
          %v958 = vpop.f32.mrb[0].mxu0
          %v959 = vpop.f32.mrb[0].mxu0
          %960 = vdwg.mxu0
          %vm961 = vcmask 261120
          %962 = vst.msk [vmem:[#allocation2] sm:$0xff] %vm961, %v956
        $region128: #{_lambda_.1} parent=91 // pred_fallthru
          _
        %v963 = vld [vmem:[#allocation2] sm:$0xff]
        %v964 = vpack.c.bf16 %v963, %v963
        %v965 = vld [vmem:[%s701] sm:$0xf]
        %v966 = vld [vmem:[%s701 + $0x4] sm:$0xf]
        %v967 = vld [vmem:[%s701 + $0x8] sm:$0xf]
        %v968 = vld [vmem:[%s701 + $0xc] sm:$0xf]
        %v969 = vld [vmem:[%s828] sm:$0x1]
        %v971 = vlaneseq
        %v972 = vshrl.u32 %v971, 7
        %v973 = vsub.s32 0, %v972
        %v974 = vrot.slane %v969, %v973
        %v980 = vunpack.c.l.b16 %v965
        %v981 = vunpack.c.l.b16 %v966
        %v982 = vunpack.c.l.b16 %v967
        %v983 = vunpack.c.l.b16 %v968
        %v984 = vpack.c.b16 %v981, %v980
        %v985 = vpack.c.b16 %v983, %v982
        %vm988 = vcmask 261120
        %v990 = vsel %vm988, %v964, 0
        %992 = vmatprep.subr.bf16.mxu0 0
        %993 = vmatpush1.bf16.msra.mxu0 %v984
        %994 = vmatprep.subr.bf16.mxu0 0
        %995 = vmatpush1.bf16.msra.mxu0 %v985
        %996 = vmatprep.subr.bf16.mxu0 0
        %997 = vmatpush1.bf16.msra.mxu0 0
        %998 = vmatprep.subr.bf16.mxu0 0
        %999 = vmatpush1.bf16.msra.mxu0 0
        %1000 = vmatprep.subr.bf16.mxu0 0
        %1001 = vmatpush1.bf16.msra.mxu0 0
        %1002 = vmatprep.subr.bf16.mxu0 0
        %1003 = vmatpush1.bf16.msra.mxu0 0
        %1004 = vmatprep.subr.bf16.mxu0 0
        %1005 = vmatpush1.bf16.msra.mxu0 0
        %1006 = vmatprep.subr.bf16.mxu0 0
        %1007 = vmatpush1.bf16.msra.mxu0 0
        %1008 = vmatprep.subr.bf16.mxu0 0
        %1009 = vmatpush1.bf16.msra.mxu0 0
        %1010 = vmatprep.subr.bf16.mxu0 0
        %1011 = vmatpush1.bf16.msra.mxu0 0
        %1012 = vmatprep.subr.bf16.mxu0 0
        %1013 = vmatpush1.bf16.msra.mxu0 0
        %1014 = vmatprep.subr.bf16.mxu0 0
        %1015 = vmatpush1.bf16.msra.mxu0 0
        %1016 = vmatprep.subr.bf16.mxu0 0
        %1017 = vmatpush1.bf16.msra.mxu0 0
        %1018 = vmatprep.subr.bf16.mxu0 0
        %1019 = vmatpush1.bf16.msra.mxu0 0
        %1020 = vmatprep.subr.bf16.mxu0 0
        %1021 = vmatpush1.bf16.msra.mxu0 0
        %1022 = vmatprep.subr.bf16.mxu0 0
        %1023 = vmatpush1.bf16.msra.mxu0 0
        %1024 = vmatprep.mubr.bf16.mxu0 0
        %1025 = vmatmul.mubr.bf16.gmra.mrb[0].mxu0 %v990
        %v1026 = vpop.f32.mrb[0].mxu0
        %v1027 = vadd.f32 %v974, %v1026
        %v1028 = vpop.f32.mrb[0].mxu0
        %v1029 = vpop.f32.mrb[0].mxu0
        %v1030 = vpop.f32.mrb[0].mxu0
        %1031 = vdwg.mxu0
        %v1032 = vld [vmem:[#allocation3] sm:$0xff]
        %v1033 = vpack.c.bf16 %v1027, %v1027
        %1035 = vrot.lane.b32.xlu0 %v1033, 96
        %v1036 = vpop.permute.xlu0 %1035
        %vm1037 = vcmask 64512
        %v1039 = vsel %vm1037, %v1033, 0
        %v1042 = vsel %vm1037, %v1036, 0
        %1044 = vmatprep.subr.bf16.mxu0 0
        %1045 = vmatpush1.bf16.xpose.msra.mxu0 %v1042
        %1046 = vmatprep.subr.bf16.mxu0 0
        %1047 = vmatpush1.bf16.xpose.msra.mxu0 0
        %1048 = vmatprep.subr.bf16.mxu0 0
        %1049 = vmatpush1.bf16.xpose.msra.mxu0 0
        %1050 = vmatprep.subr.bf16.mxu0 0
        %1051 = vmatpush1.bf16.xpose.msra.mxu0 0
        %1052 = vmatprep.subr.bf16.mxu0 0
        %1053 = vmatpush1.bf16.xpose.msra.mxu0 0
        %1054 = vmatprep.subr.bf16.mxu0 0
        %1055 = vmatpush1.bf16.xpose.msra.mxu0 0
        %1056 = vmatprep.subr.bf16.mxu0 0
        %1057 = vmatpush1.bf16.xpose.msra.mxu0 0
        %1058 = vmatprep.subr.bf16.mxu0 0
        %1059 = vmatpush1.bf16.xpose.msra.mxu0 0
        %1060 = vmatprep.subr.bf16.mxu0 0
        %1061 = vmatpush1.bf16.xpose.msra.mxu0 0
        %1062 = vmatprep.subr.bf16.mxu0 0
        %1063 = vmatpush1.bf16.xpose.msra.mxu0 0
        %1064 = vmatprep.subr.bf16.mxu0 0
        %1065 = vmatpush1.bf16.xpose.msra.mxu0 0
        %1066 = vmatprep.subr.bf16.mxu0 0
        %1067 = vmatpush1.bf16.xpose.msra.mxu0 0
        %1068 = vmatprep.subr.bf16.mxu0 0
        %1069 = vmatpush1.bf16.xpose.msra.mxu0 0
        %1070 = vmatprep.subr.bf16.mxu0 0
        %1071 = vmatpush1.bf16.xpose.msra.mxu0 0
        %1072 = vmatprep.subr.bf16.mxu0 0
        %1073 = vmatpush1.bf16.xpose.msra.mxu0 0
        %1074 = vmatprep.subr.bf16.mxu0 0
        %1075 = vmatpush1.bf16.xpose.msra.mxu0 0
        %1076 = vmatprep.mubr.bf16.mxu0 0
        %1077 = vmatmul.mubr.bf16.gmra.mrb[0].mxu0 %v1039
        %v1078 = vpop.f32.mrb[0].mxu0
        %v1079 = vadd.f32 %v1032, %v1078
        %v1080 = vpop.f32.mrb[0].mxu0
        %v1081 = vpop.f32.mrb[0].mxu0
        %v1082 = vpop.f32.mrb[0].mxu0
        %1083 = vdwg.mxu0
        %v1084 = vsel %vm1037, %v1079, -inf
        %1085 = vmax.xlane.f32.xlu0 %v1084
        %v1086 = vpop.xlane.xlu0 %1085
        %v1087 = vsub.f32 %v1079, %v1086
        %v1088 = vmul.f32 %v1087, 1.442695
        %v1089 = vpow.pop %v1088
        %v1090 = vsel %vm1037, %v1089, 0.0
        %1091 = vadd.xlane.f32.xlu0 %v1090
        %v1092 = vpop.xlane.xlu0 %1091
        %v1093 = vrcp.pop %v1092
        %v1094 = vmul.f32 %v1089, %v1093
        %v1095 = vpack.c.bf16 %v1094, %v1094
        %1096 = vrot.lane.b32.xlu0 %v1033, 64
        %v1097 = vpop.permute.xlu0 %1096
        %v1099 = vsel %vm1037, %v1095, 0
        %vm1101 = vcmask 1043456
        %v1103 = vsel %vm1101, %v1097, 0
        %1105 = vmatprep.subr.bf16.mxu0 0
        %1106 = vmatpush1.bf16.msra.mxu0 %v1103
        %1107 = vmatprep.subr.bf16.mxu0 0
        %1108 = vmatpush1.bf16.msra.mxu0 0
        %1109 = vmatprep.subr.bf16.mxu0 0
        %1110 = vmatpush1.bf16.msra.mxu0 0
        %1111 = vmatprep.subr.bf16.mxu0 0
        %1112 = vmatpush1.bf16.msra.mxu0 0
        %1113 = vmatprep.subr.bf16.mxu0 0
        %1114 = vmatpush1.bf16.msra.mxu0 0
        %1115 = vmatprep.subr.bf16.mxu0 0
        %1116 = vmatpush1.bf16.msra.mxu0 0
        %1117 = vmatprep.subr.bf16.mxu0 0
        %1118 = vmatpush1.bf16.msra.mxu0 0
        %1119 = vmatprep.subr.bf16.mxu0 0
        %1120 = vmatpush1.bf16.msra.mxu0 0
        %1121 = vmatprep.subr.bf16.mxu0 0
        %1122 = vmatpush1.bf16.msra.mxu0 0
        %1123 = vmatprep.subr.bf16.mxu0 0
        %1124 = vmatpush1.bf16.msra.mxu0 0
        %1125 = vmatprep.subr.bf16.mxu0 0
        %1126 = vmatpush1.bf16.msra.mxu0 0
        %1127 = vmatprep.subr.bf16.mxu0 0
        %1128 = vmatpush1.bf16.msra.mxu0 0
        %1129 = vmatprep.subr.bf16.mxu0 0
        %1130 = vmatpush1.bf16.msra.mxu0 0
        %1131 = vmatprep.subr.bf16.mxu0 0
        %1132 = vmatpush1.bf16.msra.mxu0 0
        %1133 = vmatprep.subr.bf16.mxu0 0
        %1134 = vmatpush1.bf16.msra.mxu0 0
        %1135 = vmatprep.subr.bf16.mxu0 0
        %1136 = vmatpush1.bf16.msra.mxu0 0
        %1137 = vmatprep.mubr.bf16.mxu0 0
        %1138 = vmatmul.mubr.bf16.gmra.mrb[0].mxu0 %v1099
        %v1139 = vpop.f32.mrb[0].mxu0
        %v1140 = vadd.f32 0.0, %v1139
        %v1141 = vpop.f32.mrb[0].mxu0
        %v1142 = vpop.f32.mrb[0].mxu0
        %v1143 = vpop.f32.mrb[0].mxu0
        %1144 = vdwg.mxu0
        %1145 = vrot.lane.b32.xlu0 %v1033, 120
        %v1146 = vpop.permute.xlu0 %1145
        %1147 = vrot.lane.b32.xlu0 %v1033, 88
        %v1148 = vpop.permute.xlu0 %1147
        %v1150 = vsel %vm1037, %v1146, 0
        %v1153 = vsel %vm1037, %v1148, 0
        %1155 = vmatprep.subr.bf16.mxu0 0
        %1156 = vmatpush1.bf16.xpose.msra.mxu0 %v1153
        %1157 = vmatprep.subr.bf16.mxu0 0
        %1158 = vmatpush1.bf16.xpose.msra.mxu0 0
        %1159 = vmatprep.subr.bf16.mxu0 0
        %1160 = vmatpush1.bf16.xpose.msra.mxu0 0
        %1161 = vmatprep.subr.bf16.mxu0 0
        %1162 = vmatpush1.bf16.xpose.msra.mxu0 0
        %1163 = vmatprep.subr.bf16.mxu0 0
        %1164 = vmatpush1.bf16.xpose.msra.mxu0 0
        %1165 = vmatprep.subr.bf16.mxu0 0
        %1166 = vmatpush1.bf16.xpose.msra.mxu0 0
        %1167 = vmatprep.subr.bf16.mxu0 0
        %1168 = vmatpush1.bf16.xpose.msra.mxu0 0
        %1169 = vmatprep.subr.bf16.mxu0 0
        %1170 = vmatpush1.bf16.xpose.msra.mxu0 0
        %1171 = vmatprep.subr.bf16.mxu0 0
        %1172 = vmatpush1.bf16.xpose.msra.mxu0 0
        %1173 = vmatprep.subr.bf16.mxu0 0
        %1174 = vmatpush1.bf16.xpose.msra.mxu0 0
        %1175 = vmatprep.subr.bf16.mxu0 0
        %1176 = vmatpush1.bf16.xpose.msra.mxu0 0
        %1177 = vmatprep.subr.bf16.mxu0 0
        %1178 = vmatpush1.bf16.xpose.msra.mxu0 0
        %1179 = vmatprep.subr.bf16.mxu0 0
        %1180 = vmatpush1.bf16.xpose.msra.mxu0 0
        %1181 = vmatprep.subr.bf16.mxu0 0
        %1182 = vmatpush1.bf16.xpose.msra.mxu0 0
        %1183 = vmatprep.subr.bf16.mxu0 0
        %1184 = vmatpush1.bf16.xpose.msra.mxu0 0
        %1185 = vmatprep.subr.bf16.mxu0 0
        %1186 = vmatpush1.bf16.xpose.msra.mxu0 0
        %1187 = vmatprep.mubr.bf16.mxu0 0
        %1188 = vmatmul.mubr.bf16.gmra.mrb[0].mxu0 %v1150
        %v1189 = vpop.f32.mrb[0].mxu0
        %v1190 = vadd.f32 %v1032, %v1189
        %v1191 = vpop.f32.mrb[0].mxu0
        %v1192 = vpop.f32.mrb[0].mxu0
        %v1193 = vpop.f32.mrb[0].mxu0
        %1194 = vdwg.mxu0
        %v1195 = vsel %vm1037, %v1190, -inf
        %1196 = vmax.xlane.f32.xlu0 %v1195
        %v1197 = vpop.xlane.xlu0 %1196
        %v1198 = vsub.f32 %v1190, %v1197
        %v1199 = vmul.f32 %v1198, 1.442695
        %v1200 = vpow.pop %v1199
        %v1201 = vsel %vm1037, %v1200, 0.0
        %1202 = vadd.xlane.f32.xlu0 %v1201
        %v1203 = vpop.xlane.xlu0 %1202
        %v1204 = vrcp.pop %v1203
        %v1205 = vmul.f32 %v1200, %v1204
        %v1206 = vpack.c.bf16 %v1205, %v1205
        %1207 = vrot.lane.b32.xlu0 %v1033, 56
        %v1208 = vpop.permute.xlu0 %1207
        %v1210 = vsel %vm1037, %v1206, 0
        %v1213 = vsel %vm1101, %v1208, 0
        %1215 = vmatprep.subr.bf16.mxu0 0
        %1216 = vmatpush1.bf16.msra.mxu0 %v1213
        %1217 = vmatprep.subr.bf16.mxu0 0
        %1218 = vmatpush1.bf16.msra.mxu0 0
        %1219 = vmatprep.subr.bf16.mxu0 0
        %1220 = vmatpush1.bf16.msra.mxu0 0
        %1221 = vmatprep.subr.bf16.mxu0 0
        %1222 = vmatpush1.bf16.msra.mxu0 0
        %1223 = vmatprep.subr.bf16.mxu0 0
        %1224 = vmatpush1.bf16.msra.mxu0 0
        %1225 = vmatprep.subr.bf16.mxu0 0
        %1226 = vmatpush1.bf16.msra.mxu0 0
        %1227 = vmatprep.subr.bf16.mxu0 0
        %1228 = vmatpush1.bf16.msra.mxu0 0
        %1229 = vmatprep.subr.bf16.mxu0 0
        %1230 = vmatpush1.bf16.msra.mxu0 0
        %1231 = vmatprep.subr.bf16.mxu0 0
        %1232 = vmatpush1.bf16.msra.mxu0 0
        %1233 = vmatprep.subr.bf16.mxu0 0
        %1234 = vmatpush1.bf16.msra.mxu0 0
        %1235 = vmatprep.subr.bf16.mxu0 0
        %1236 = vmatpush1.bf16.msra.mxu0 0
        %1237 = vmatprep.subr.bf16.mxu0 0
        %1238 = vmatpush1.bf16.msra.mxu0 0
        %1239 = vmatprep.subr.bf16.mxu0 0
        %1240 = vmatpush1.bf16.msra.mxu0 0
        %1241 = vmatprep.subr.bf16.mxu0 0
        %1242 = vmatpush1.bf16.msra.mxu0 0
        %1243 = vmatprep.subr.bf16.mxu0 0
        %1244 = vmatpush1.bf16.msra.mxu0 0
        %1245 = vmatprep.subr.bf16.mxu0 0
        %1246 = vmatpush1.bf16.msra.mxu0 0
        %1247 = vmatprep.mubr.bf16.mxu0 0
        %1248 = vmatmul.mubr.bf16.gmra.mrb[0].mxu0 %v1210
        %v1249 = vpop.f32.mrb[0].mxu0
        %v1250 = vadd.f32 0.0, %v1249
        %v1251 = vpop.f32.mrb[0].mxu0
        %v1252 = vpop.f32.mrb[0].mxu0
        %v1253 = vpop.f32.mrb[0].mxu0
        %1254 = vdwg.mxu0
        %1255 = vrot.lane.b32.xlu0 %v1033, 112
        %v1256 = vpop.permute.xlu0 %1255
        %1257 = vrot.lane.b32.xlu0 %v1033, 80
        %v1258 = vpop.permute.xlu0 %1257
        %v1260 = vsel %vm1037, %v1256, 0
        %v1263 = vsel %vm1037, %v1258, 0
        %1265 = vmatprep.subr.bf16.mxu0 0
        %1266 = vmatpush1.bf16.xpose.msra.mxu0 %v1263
        %1267 = vmatprep.subr.bf16.mxu0 0
        %1268 = vmatpush1.bf16.xpose.msra.mxu0 0
        %1269 = vmatprep.subr.bf16.mxu0 0
        %1270 = vmatpush1.bf16.xpose.msra.mxu0 0
        %1271 = vmatprep.subr.bf16.mxu0 0
        %1272 = vmatpush1.bf16.xpose.msra.mxu0 0
        %1273 = vmatprep.subr.bf16.mxu0 0
        %1274 = vmatpush1.bf16.xpose.msra.mxu0 0
        %1275 = vmatprep.subr.bf16.mxu0 0
        %1276 = vmatpush1.bf16.xpose.msra.mxu0 0
        %1277 = vmatprep.subr.bf16.mxu0 0
        %1278 = vmatpush1.bf16.xpose.msra.mxu0 0
        %1279 = vmatprep.subr.bf16.mxu0 0
        %1280 = vmatpush1.bf16.xpose.msra.mxu0 0
        %1281 = vmatprep.subr.bf16.mxu0 0
        %1282 = vmatpush1.bf16.xpose.msra.mxu0 0
        %1283 = vmatprep.subr.bf16.mxu0 0
        %1284 = vmatpush1.bf16.xpose.msra.mxu0 0
        %1285 = vmatprep.subr.bf16.mxu0 0
        %1286 = vmatpush1.bf16.xpose.msra.mxu0 0
        %1287 = vmatprep.subr.bf16.mxu0 0
        %1288 = vmatpush1.bf16.xpose.msra.mxu0 0
        %1289 = vmatprep.subr.bf16.mxu0 0
        %1290 = vmatpush1.bf16.xpose.msra.mxu0 0
        %1291 = vmatprep.subr.bf16.mxu0 0
        %1292 = vmatpush1.bf16.xpose.msra.mxu0 0
        %1293 = vmatprep.subr.bf16.mxu0 0
        %1294 = vmatpush1.bf16.xpose.msra.mxu0 0
        %1295 = vmatprep.subr.bf16.mxu0 0
        %1296 = vmatpush1.bf16.xpose.msra.mxu0 0
        %1297 = vmatprep.mubr.bf16.mxu0 0
        %1298 = vmatmul.mubr.bf16.gmra.mrb[0].mxu0 %v1260
        %v1299 = vpop.f32.mrb[0].mxu0
        %v1300 = vadd.f32 %v1032, %v1299
        %v1301 = vpop.f32.mrb[0].mxu0
        %v1302 = vpop.f32.mrb[0].mxu0
        %v1303 = vpop.f32.mrb[0].mxu0
        %1304 = vdwg.mxu0
        %v1305 = vsel %vm1037, %v1300, -inf
        %1306 = vmax.xlane.f32.xlu0 %v1305
        %v1307 = vpop.xlane.xlu0 %1306
        %v1308 = vsub.f32 %v1300, %v1307
        %v1309 = vmul.f32 %v1308, 1.442695
        %v1310 = vpow.pop %v1309
        %v1311 = vsel %vm1037, %v1310, 0.0
        %1312 = vadd.xlane.f32.xlu0 %v1311
        %v1313 = vpop.xlane.xlu0 %1312
        %v1314 = vrcp.pop %v1313
        %v1315 = vmul.f32 %v1310, %v1314
        %v1316 = vpack.c.bf16 %v1315, %v1315
        %1317 = vrot.lane.b32.xlu0 %v1033, 48
        %v1318 = vpop.permute.xlu0 %1317
        %v1320 = vsel %vm1037, %v1316, 0
        %v1323 = vsel %vm1101, %v1318, 0
        %1325 = vmatprep.subr.bf16.mxu0 0
        %1326 = vmatpush1.bf16.msra.mxu0 %v1323
        %1327 = vmatprep.subr.bf16.mxu0 0
        %1328 = vmatpush1.bf16.msra.mxu0 0
        %1329 = vmatprep.subr.bf16.mxu0 0
        %1330 = vmatpush1.bf16.msra.mxu0 0
        %1331 = vmatprep.subr.bf16.mxu0 0
        %1332 = vmatpush1.bf16.msra.mxu0 0
        %1333 = vmatprep.subr.bf16.mxu0 0
        %1334 = vmatpush1.bf16.msra.mxu0 0
        %1335 = vmatprep.subr.bf16.mxu0 0
        %1336 = vmatpush1.bf16.msra.mxu0 0
        %1337 = vmatprep.subr.bf16.mxu0 0
        %1338 = vmatpush1.bf16.msra.mxu0 0
        %1339 = vmatprep.subr.bf16.mxu0 0
        %1340 = vmatpush1.bf16.msra.mxu0 0
        %1341 = vmatprep.subr.bf16.mxu0 0
        %1342 = vmatpush1.bf16.msra.mxu0 0
        %1343 = vmatprep.subr.bf16.mxu0 0
        %1344 = vmatpush1.bf16.msra.mxu0 0
        %1345 = vmatprep.subr.bf16.mxu0 0
        %1346 = vmatpush1.bf16.msra.mxu0 0
        %1347 = vmatprep.subr.bf16.mxu0 0
        %1348 = vmatpush1.bf16.msra.mxu0 0
        %1349 = vmatprep.subr.bf16.mxu0 0
        %1350 = vmatpush1.bf16.msra.mxu0 0
        %1351 = vmatprep.subr.bf16.mxu0 0
        %1352 = vmatpush1.bf16.msra.mxu0 0
        %1353 = vmatprep.subr.bf16.mxu0 0
        %1354 = vmatpush1.bf16.msra.mxu0 0
        %1355 = vmatprep.subr.bf16.mxu0 0
        %1356 = vmatpush1.bf16.msra.mxu0 0
        %1357 = vmatprep.mubr.bf16.mxu0 0
        %1358 = vmatmul.mubr.bf16.gmra.mrb[0].mxu0 %v1320
        %v1359 = vpop.f32.mrb[0].mxu0
        %v1360 = vadd.f32 0.0, %v1359
        %v1361 = vpop.f32.mrb[0].mxu0
        %v1362 = vpop.f32.mrb[0].mxu0
        %v1363 = vpop.f32.mrb[0].mxu0
        %1364 = vdwg.mxu0
        %1365 = vrot.lane.b32.xlu0 %v1033, 104
        %v1366 = vpop.permute.xlu0 %1365
        %1367 = vrot.lane.b32.xlu0 %v1033, 72
        %v1368 = vpop.permute.xlu0 %1367
        %v1370 = vsel %vm1037, %v1366, 0
        %v1373 = vsel %vm1037, %v1368, 0
        %1375 = vmatprep.subr.bf16.mxu0 0
        %1376 = vmatpush1.bf16.xpose.msra.mxu0 %v1373
        %1377 = vmatprep.subr.bf16.mxu0 0
        %1378 = vmatpush1.bf16.xpose.msra.mxu0 0
        %1379 = vmatprep.subr.bf16.mxu0 0
        %1380 = vmatpush1.bf16.xpose.msra.mxu0 0
        %1381 = vmatprep.subr.bf16.mxu0 0
        %1382 = vmatpush1.bf16.xpose.msra.mxu0 0
        %1383 = vmatprep.subr.bf16.mxu0 0
        %1384 = vmatpush1.bf16.xpose.msra.mxu0 0
        %1385 = vmatprep.subr.bf16.mxu0 0
        %1386 = vmatpush1.bf16.xpose.msra.mxu0 0
        %1387 = vmatprep.subr.bf16.mxu0 0
        %1388 = vmatpush1.bf16.xpose.msra.mxu0 0
        %1389 = vmatprep.subr.bf16.mxu0 0
        %1390 = vmatpush1.bf16.xpose.msra.mxu0 0
        %1391 = vmatprep.subr.bf16.mxu0 0
        %1392 = vmatpush1.bf16.xpose.msra.mxu0 0
        %1393 = vmatprep.subr.bf16.mxu0 0
        %1394 = vmatpush1.bf16.xpose.msra.mxu0 0
        %1395 = vmatprep.subr.bf16.mxu0 0
        %1396 = vmatpush1.bf16.xpose.msra.mxu0 0
        %1397 = vmatprep.subr.bf16.mxu0 0
        %1398 = vmatpush1.bf16.xpose.msra.mxu0 0
        %1399 = vmatprep.subr.bf16.mxu0 0
        %1400 = vmatpush1.bf16.xpose.msra.mxu0 0
        %1401 = vmatprep.subr.bf16.mxu0 0
        %1402 = vmatpush1.bf16.xpose.msra.mxu0 0
        %1403 = vmatprep.subr.bf16.mxu0 0
        %1404 = vmatpush1.bf16.xpose.msra.mxu0 0
        %1405 = vmatprep.subr.bf16.mxu0 0
        %1406 = vmatpush1.bf16.xpose.msra.mxu0 0
        %1407 = vmatprep.mubr.bf16.mxu0 0
        %1408 = vmatmul.mubr.bf16.gmra.mrb[0].mxu0 %v1370
        %v1409 = vpop.f32.mrb[0].mxu0
        %v1410 = vadd.f32 %v1032, %v1409
        %v1411 = vpop.f32.mrb[0].mxu0
        %v1412 = vpop.f32.mrb[0].mxu0
        %v1413 = vpop.f32.mrb[0].mxu0
        %1414 = vdwg.mxu0
        %v1415 = vsel %vm1037, %v1410, -inf
        %1416 = vmax.xlane.f32.xlu0 %v1415
        %v1417 = vpop.xlane.xlu0 %1416
        %v1418 = vsub.f32 %v1410, %v1417
        %v1419 = vmul.f32 %v1418, 1.442695
        %v1420 = vpow.pop %v1419
        %v1421 = vsel %vm1037, %v1420, 0.0
        %1422 = vadd.xlane.f32.xlu0 %v1421
        %v1423 = vpop.xlane.xlu0 %1422
        %v1424 = vrcp.pop %v1423
        %v1425 = vmul.f32 %v1420, %v1424
        %v1426 = vpack.c.bf16 %v1425, %v1425
        %1427 = vrot.lane.b32.xlu0 %v1033, 40
        %v1428 = vpop.permute.xlu0 %1427
        %v1430 = vsel %vm1037, %v1426, 0
        %v1433 = vsel %vm1101, %v1428, 0
        %1435 = vmatprep.subr.bf16.mxu0 0
        %1436 = vmatpush1.bf16.msra.mxu0 %v1433
        %1437 = vmatprep.subr.bf16.mxu0 0
        %1438 = vmatpush1.bf16.msra.mxu0 0
        %1439 = vmatprep.subr.bf16.mxu0 0
        %1440 = vmatpush1.bf16.msra.mxu0 0
        %1441 = vmatprep.subr.bf16.mxu0 0
        %1442 = vmatpush1.bf16.msra.mxu0 0
        %1443 = vmatprep.subr.bf16.mxu0 0
        %1444 = vmatpush1.bf16.msra.mxu0 0
        %1445 = vmatprep.subr.bf16.mxu0 0
        %1446 = vmatpush1.bf16.msra.mxu0 0
        %1447 = vmatprep.subr.bf16.mxu0 0
        %1448 = vmatpush1.bf16.msra.mxu0 0
        %1449 = vmatprep.subr.bf16.mxu0 0
        %1450 = vmatpush1.bf16.msra.mxu0 0
        %1451 = vmatprep.subr.bf16.mxu0 0
        %1452 = vmatpush1.bf16.msra.mxu0 0
        %1453 = vmatprep.subr.bf16.mxu0 0
        %1454 = vmatpush1.bf16.msra.mxu0 0
        %1455 = vmatprep.subr.bf16.mxu0 0
        %1456 = vmatpush1.bf16.msra.mxu0 0
        %1457 = vmatprep.subr.bf16.mxu0 0
        %1458 = vmatpush1.bf16.msra.mxu0 0
        %1459 = vmatprep.subr.bf16.mxu0 0
        %1460 = vmatpush1.bf16.msra.mxu0 0
        %1461 = vmatprep.subr.bf16.mxu0 0
        %1462 = vmatpush1.bf16.msra.mxu0 0
        %1463 = vmatprep.subr.bf16.mxu0 0
        %1464 = vmatpush1.bf16.msra.mxu0 0
        %1465 = vmatprep.subr.bf16.mxu0 0
        %1466 = vmatpush1.bf16.msra.mxu0 0
        %1467 = vmatprep.mubr.bf16.mxu0 0
        %1468 = vmatmul.mubr.bf16.gmra.mrb[0].mxu0 %v1430
        %v1469 = vpop.f32.mrb[0].mxu0
        %v1470 = vadd.f32 0.0, %v1469
        %v1471 = vpop.f32.mrb[0].mxu0
        %v1472 = vpop.f32.mrb[0].mxu0
        %v1473 = vpop.f32.mrb[0].mxu0
        %1474 = vdwg.mxu0
        %1476 = vrot.lane.b32.xlu0 %v1250, 8
        %v1477 = vpop.permute.xlu0 %1476
        %1480 = vrot.lane.b32.xlu0 %v1360, 16
        %v1481 = vpop.permute.xlu0 %1480
        %1484 = vrot.lane.b32.xlu0 %v1470, 24
        %v1485 = vpop.permute.xlu0 %1484
        %v1487 = vsel %vm1037, %v1140, %v1477
        %vm1488 = vcmask 130048
        %v1489 = vsel %vm1488, %v1487, %v1481
        %vm1490 = vcmask 195584
        %v1491 = vsel %vm1490, %v1489, %v1485
        %v1492 = vpack.c.bf16 %v1491, %v1491
        %v1493 = vld [vmem:[%s728] sm:$0x1]
        %v1494 = vld [vmem:[%s728 + $0x1] sm:$0x1]
        %v1495 = vld [vmem:[%s728 + $0x2] sm:$0x1]
        %v1496 = vld [vmem:[%s728 + $0x3] sm:$0x1]
        %v1497 = vld [vmem:[%s728 + $0x4] sm:$0x1]
        %v1498 = vld [vmem:[%s728 + $0x5] sm:$0x1]
        %v1499 = vld [vmem:[%s710] sm:$0xf]
        %v1500 = vld [vmem:[%s710 + $0x4] sm:$0xf]
        %v1501 = vld [vmem:[%s710 + $0x8] sm:$0xf]
        %v1502 = vld [vmem:[%s710 + $0xc] sm:$0xf]
        %v1503 = vlaneseq
        %v1504 = vshrl.u32 %v1503, 7
        %v1505 = vsub.s32 0, %v1504
        %v1506 = vrot.slane %v1493, %v1505
        %v1511 = vunpack.c.l.b16 %v1499
        %v1512 = vunpack.c.l.b16 %v1500
        %v1513 = vunpack.c.l.b16 %v1501
        %v1514 = vunpack.c.l.b16 %v1502
        %v1515 = vpack.c.b16 %v1512, %v1511
        %v1516 = vpack.c.b16 %v1514, %v1513
        %v1520 = vsel %vm988, %v1492, 0
        %1522 = vmatprep.subr.bf16.mxu0 0
        %1523 = vmatpush1.bf16.msra.mxu0 %v1515
        %1524 = vmatprep.subr.bf16.mxu0 0
        %1525 = vmatpush1.bf16.msra.mxu0 %v1516
        %1526 = vmatprep.subr.bf16.mxu0 0
        %1527 = vmatpush1.bf16.msra.mxu0 0
        %1528 = vmatprep.subr.bf16.mxu0 0
        %1529 = vmatpush1.bf16.msra.mxu0 0
        %1530 = vmatprep.subr.bf16.mxu0 0
        %1531 = vmatpush1.bf16.msra.mxu0 0
        %1532 = vmatprep.subr.bf16.mxu0 0
        %1533 = vmatpush1.bf16.msra.mxu0 0
        %1534 = vmatprep.subr.bf16.mxu0 0
        %1535 = vmatpush1.bf16.msra.mxu0 0
        %1536 = vmatprep.subr.bf16.mxu0 0
        %1537 = vmatpush1.bf16.msra.mxu0 0
        %1538 = vmatprep.subr.bf16.mxu0 0
        %1539 = vmatpush1.bf16.msra.mxu0 0
        %1540 = vmatprep.subr.bf16.mxu0 0
        %1541 = vmatpush1.bf16.msra.mxu0 0
        %1542 = vmatprep.subr.bf16.mxu0 0
        %1543 = vmatpush1.bf16.msra.mxu0 0
        %1544 = vmatprep.subr.bf16.mxu0 0
        %1545 = vmatpush1.bf16.msra.mxu0 0
        %1546 = vmatprep.subr.bf16.mxu0 0
        %1547 = vmatpush1.bf16.msra.mxu0 0
        %1548 = vmatprep.subr.bf16.mxu0 0
        %1549 = vmatpush1.bf16.msra.mxu0 0
        %1550 = vmatprep.subr.bf16.mxu0 0
        %1551 = vmatpush1.bf16.msra.mxu0 0
        %1552 = vmatprep.subr.bf16.mxu0 0
        %1553 = vmatpush1.bf16.msra.mxu0 0
        %1554 = vmatprep.mubr.bf16.mxu0 0
        %1555 = vmatmul.mubr.bf16.gmra.mrb[0].mxu0 %v1520
        %v1556 = vpop.f32.mrb[0].mxu0
        %v1557 = vadd.f32 %v1506, %v1556
        %v1558 = vpop.f32.mrb[0].mxu0
        %v1559 = vpop.f32.mrb[0].mxu0
        %v1560 = vpop.f32.mrb[0].mxu0
        %1561 = vdwg.mxu0
        %v1562 = vadd.f32 %v963, %v1557
        %v1563 = vsel %vm988, %v1562, 0.0
        %1564 = vadd.xlane.f32.xlu0 %v1563
        %v1565 = vpop.xlane.xlu0 %1564
        %v1566 = vrcp.pop 32.0
        %v1567 = vmul.f32 %v1565, %v1566
        %v1568 = vsub.f32 %v1562, %v1567
        %v1569 = vmul.f32 %v1568, %v1568
        %v1570 = vsel %vm988, %v1569, 0.0
        %1571 = vadd.xlane.f32.xlu0 %v1570
        %v1572 = vpop.xlane.xlu0 %1571
        %v1573 = vmul.f32 %v1572, %v1566
        %v1574 = vadd.f32 %v1573, 1e-05
        %v1575 = vrsqrt.pop %v1574
        %v1576 = vmul.f32 %v1568, %v1575
        %v1577 = vlaneseq
        %v1578 = vshrl.u32 %v1577, 7
        %v1579 = vsub.s32 0, %v1578
        %v1580 = vrot.slane %v1494, %v1579
        %v1581 = vmul.f32 %v1576, %v1580
        %v1582 = vlaneseq
        %v1583 = vshrl.u32 %v1582, 7
        %v1584 = vsub.s32 0, %v1583
        %v1585 = vrot.slane %v1495, %v1584
        %v1586 = vadd.f32 %v1581, %v1585
        %v1587 = vpack.c.bf16 %v1586, %v1586
        %v1588 = vld [vmem:[%s833] sm:$0xf]
        %v1589 = vld [vmem:[%s833 + $0x4] sm:$0xf]
        %v1590 = vld [vmem:[%s833 + $0x8] sm:$0xf]
        %v1591 = vld [vmem:[%s833 + $0xc] sm:$0xf]
        %v1592 = vld [vmem:[%s836] sm:$0x1]
        %v1594 = vlaneseq
        %v1595 = vshrl.u32 %v1594, 7
        %v1596 = vsub.s32 0, %v1595
        %v1597 = vrot.slane %v1592, %v1596
        %v1603 = vunpack.c.l.b16 %v1588
        %v1604 = vunpack.c.l.b16 %v1589
        %v1605 = vunpack.c.l.b16 %v1590
        %v1606 = vunpack.c.l.b16 %v1591
        %v1607 = vpack.c.b16 %v1604, %v1603
        %v1608 = vpack.c.b16 %v1606, %v1605
        %v1612 = vsel %vm988, %v1587, 0
        %1614 = vmatprep.subr.bf16.mxu0 0
        %1615 = vmatpush1.bf16.msra.mxu0 %v1607
        %1616 = vmatprep.subr.bf16.mxu0 0
        %1617 = vmatpush1.bf16.msra.mxu0 %v1608
        %1618 = vmatprep.subr.bf16.mxu0 0
        %1619 = vmatpush1.bf16.msra.mxu0 0
        %1620 = vmatprep.subr.bf16.mxu0 0
        %1621 = vmatpush1.bf16.msra.mxu0 0
        %1622 = vmatprep.subr.bf16.mxu0 0
        %1623 = vmatpush1.bf16.msra.mxu0 0
        %1624 = vmatprep.subr.bf16.mxu0 0
        %1625 = vmatpush1.bf16.msra.mxu0 0
        %1626 = vmatprep.subr.bf16.mxu0 0
        %1627 = vmatpush1.bf16.msra.mxu0 0
        %1628 = vmatprep.subr.bf16.mxu0 0
        %1629 = vmatpush1.bf16.msra.mxu0 0
        %1630 = vmatprep.subr.bf16.mxu0 0
        %1631 = vmatpush1.bf16.msra.mxu0 0
        %1632 = vmatprep.subr.bf16.mxu0 0
        %1633 = vmatpush1.bf16.msra.mxu0 0
        %1634 = vmatprep.subr.bf16.mxu0 0
        %1635 = vmatpush1.bf16.msra.mxu0 0
        %1636 = vmatprep.subr.bf16.mxu0 0
        %1637 = vmatpush1.bf16.msra.mxu0 0
        %1638 = vmatprep.subr.bf16.mxu0 0
        %1639 = vmatpush1.bf16.msra.mxu0 0
        %1640 = vmatprep.subr.bf16.mxu0 0
        %1641 = vmatpush1.bf16.msra.mxu0 0
        %1642 = vmatprep.subr.bf16.mxu0 0
        %1643 = vmatpush1.bf16.msra.mxu0 0
        %1644 = vmatprep.subr.bf16.mxu0 0
        %1645 = vmatpush1.bf16.msra.mxu0 0
        %1646 = vmatprep.mubr.bf16.mxu0 0
        %1647 = vmatmul.mubr.bf16.gmra.mrb[0].mxu0 %v1612
        %v1648 = vpop.f32.mrb[0].mxu0
        %v1649 = vadd.f32 %v1597, %v1648
        %v1650 = vpop.f32.mrb[0].mxu0
        %v1651 = vpop.f32.mrb[0].mxu0
        %v1652 = vpop.f32.mrb[0].mxu0
        %1653 = vdwg.mxu0
        %v1654 = vmax.f32 %v1649, 0.0
        %v1655 = vpack.c.bf16 %v1654, %v1654
        %v1656 = vld [vmem:[%s719] sm:$0xf]
        %v1657 = vld [vmem:[%s719 + $0x4] sm:$0xf]
        %v1658 = vld [vmem:[%s719 + $0x8] sm:$0xf]
        %v1659 = vld [vmem:[%s719 + $0xc] sm:$0xf]
        %v1660 = vld [vmem:[%s719 + $0x10] sm:$0xf]
        %v1661 = vld [vmem:[%s719 + $0x14] sm:$0xf]
        %v1662 = vld [vmem:[%s719 + $0x18] sm:$0xf]
        %v1663 = vld [vmem:[%s719 + $0x1c] sm:$0xf]
        %v1664 = vld [vmem:[%s719 + $0x20] sm:$0xf]
        %v1665 = vld [vmem:[%s719 + $0x24] sm:$0xf]
        %v1666 = vld [vmem:[%s719 + $0x28] sm:$0xf]
        %v1667 = vld [vmem:[%s719 + $0x2c] sm:$0xf]
        %v1668 = vld [vmem:[%s719 + $0x30] sm:$0xf]
        %v1669 = vld [vmem:[%s719 + $0x34] sm:$0xf]
        %v1670 = vld [vmem:[%s719 + $0x38] sm:$0xf]
        %v1671 = vld [vmem:[%s719 + $0x3c] sm:$0xf]
        %v1672 = vlaneseq
        %v1673 = vshrl.u32 %v1672, 7
        %v1674 = vsub.s32 0, %v1673
        %v1675 = vrot.slane %v1496, %v1674
        %v1692 = vunpack.c.l.b16 %v1656
        %v1693 = vunpack.c.l.b16 %v1657
        %v1694 = vunpack.c.l.b16 %v1658
        %v1695 = vunpack.c.l.b16 %v1659
        %v1696 = vunpack.c.l.b16 %v1660
        %v1697 = vunpack.c.l.b16 %v1661
        %v1698 = vunpack.c.l.b16 %v1662
        %v1699 = vunpack.c.l.b16 %v1663
        %v1700 = vunpack.c.l.b16 %v1664
        %v1701 = vunpack.c.l.b16 %v1665
        %v1702 = vunpack.c.l.b16 %v1666
        %v1703 = vunpack.c.l.b16 %v1667
        %v1704 = vunpack.c.l.b16 %v1668
        %v1705 = vunpack.c.l.b16 %v1669
        %v1706 = vunpack.c.l.b16 %v1670
        %v1707 = vunpack.c.l.b16 %v1671
        %v1708 = vpack.c.b16 %v1693, %v1692
        %v1709 = vpack.c.b16 %v1695, %v1694
        %v1710 = vpack.c.b16 %v1697, %v1696
        %v1711 = vpack.c.b16 %v1699, %v1698
        %v1712 = vpack.c.b16 %v1701, %v1700
        %v1713 = vpack.c.b16 %v1703, %v1702
        %v1714 = vpack.c.b16 %v1705, %v1704
        %v1715 = vpack.c.b16 %v1707, %v1706
        %1724 = vmatprep.subr.bf16.mxu0 0
        %1725 = vmatpush1.bf16.msra.mxu0 %v1708
        %1726 = vmatprep.subr.bf16.mxu0 0
        %1727 = vmatpush1.bf16.msra.mxu0 %v1709
        %1728 = vmatprep.subr.bf16.mxu0 0
        %1729 = vmatpush1.bf16.msra.mxu0 %v1710
        %1730 = vmatprep.subr.bf16.mxu0 0
        %1731 = vmatpush1.bf16.msra.mxu0 %v1711
        %1732 = vmatprep.subr.bf16.mxu0 0
        %1733 = vmatpush1.bf16.msra.mxu0 %v1712
        %1734 = vmatprep.subr.bf16.mxu0 0
        %1735 = vmatpush1.bf16.msra.mxu0 %v1713
        %1736 = vmatprep.subr.bf16.mxu0 0
        %1737 = vmatpush1.bf16.msra.mxu0 %v1714
        %1738 = vmatprep.subr.bf16.mxu0 0
        %1739 = vmatpush1.bf16.msra.mxu0 %v1715
        %1740 = vmatprep.subr.bf16.mxu0 0
        %1741 = vmatpush1.bf16.msra.mxu0 0
        %1742 = vmatprep.subr.bf16.mxu0 0
        %1743 = vmatpush1.bf16.msra.mxu0 0
        %1744 = vmatprep.subr.bf16.mxu0 0
        %1745 = vmatpush1.bf16.msra.mxu0 0
        %1746 = vmatprep.subr.bf16.mxu0 0
        %1747 = vmatpush1.bf16.msra.mxu0 0
        %1748 = vmatprep.subr.bf16.mxu0 0
        %1749 = vmatpush1.bf16.msra.mxu0 0
        %1750 = vmatprep.subr.bf16.mxu0 0
        %1751 = vmatpush1.bf16.msra.mxu0 0
        %1752 = vmatprep.subr.bf16.mxu0 0
        %1753 = vmatpush1.bf16.msra.mxu0 0
        %1754 = vmatprep.subr.bf16.mxu0 0
        %1755 = vmatpush1.bf16.msra.mxu0 0
        %1756 = vmatprep.mubr.bf16.mxu0 0
        %1757 = vmatmul.mubr.bf16.gmra.mrb[0].mxu0 %v1655
        %v1758 = vpop.f32.mrb[0].mxu0
        %v1759 = vadd.f32 %v1675, %v1758
        %v1760 = vpop.f32.mrb[0].mxu0
        %v1761 = vpop.f32.mrb[0].mxu0
        %v1762 = vpop.f32.mrb[0].mxu0
        %1763 = vdwg.mxu0
        %v1764 = vadd.f32 %v1586, %v1759
        %v1765 = vsel %vm988, %v1764, 0.0
        %1766 = vadd.xlane.f32.xlu0 %v1765
        %v1767 = vpop.xlane.xlu0 %1766
        %v1768 = vmul.f32 %v1767, %v1566
        %v1769 = vsub.f32 %v1764, %v1768
        %v1770 = vmul.f32 %v1769, %v1769
        %v1771 = vsel %vm988, %v1770, 0.0
        %1772 = vadd.xlane.f32.xlu0 %v1771
        %v1773 = vpop.xlane.xlu0 %1772
        %v1774 = vmul.f32 %v1773, %v1566
        %v1775 = vadd.f32 %v1774, 1e-05
        %v1776 = vrsqrt.pop %v1775
        %v1777 = vmul.f32 %v1769, %v1776
        %v1778 = vlaneseq
        %v1779 = vshrl.u32 %v1778, 7
        %v1780 = vsub.s32 0, %v1779
        %v1781 = vrot.slane %v1497, %v1780
        %v1782 = vmul.f32 %v1777, %v1781
        %v1783 = vlaneseq
        %v1784 = vshrl.u32 %v1783, 7
        %v1785 = vsub.s32 0, %v1784
        %v1786 = vrot.slane %v1498, %v1785
        %v1787 = vadd.f32 %v1782, %v1786
        %1788 = vst.msk [vmem:[#allocation2] sm:$0xff] %vm988, %v1787
        %p1789 = scmp.eq.s32.totalorder %s43, 5
        // Predicated region
        $region129: #{_lambda_.1} parent=91 // pred_check
          %p1790 = pneg %p1789
        $region130: #{_lambda_.1} parent=91 // pred_check_branch
          %1792 = sbr.rel (%p1790) target = $region132
        $region131: #{_lambda_.1} parent=91 // pred_region
          %v1793 = vpack.c.bf16 %v1787, %v1787
          %v1794 = vld [vmem:[#allocation12] sm:$0xf]
          %v1795 = vld [vmem:[#allocation12 + $0x4] sm:$0xf]
          %v1796 = vld [vmem:[#allocation12 + $0x8] sm:$0xf]
          %v1797 = vld [vmem:[#allocation12 + $0xc] sm:$0xf]
          %v1798 = vld [vmem:[%s13] sm:$0x1]
          %v1800 = vlaneseq
          %v1801 = vshrl.u32 %v1800, 7
          %v1802 = vsub.s32 0, %v1801
          %v1803 = vrot.slane %v1798, %v1802
          %v1809 = vunpack.c.l.b16 %v1794
          %v1810 = vunpack.c.l.b16 %v1795
          %v1811 = vunpack.c.l.b16 %v1796
          %v1812 = vunpack.c.l.b16 %v1797
          %v1813 = vpack.c.b16 %v1810, %v1809
          %v1814 = vpack.c.b16 %v1812, %v1811
          %v1818 = vsel %vm988, %v1793, 0
          %1820 = vmatprep.subr.bf16.mxu0 0
          %1821 = vmatpush1.bf16.msra.mxu0 %v1813
          %1822 = vmatprep.subr.bf16.mxu0 0
          %1823 = vmatpush1.bf16.msra.mxu0 %v1814
          %1824 = vmatprep.subr.bf16.mxu0 0
          %1825 = vmatpush1.bf16.msra.mxu0 0
          %1826 = vmatprep.subr.bf16.mxu0 0
          %1827 = vmatpush1.bf16.msra.mxu0 0
          %1828 = vmatprep.subr.bf16.mxu0 0
          %1829 = vmatpush1.bf16.msra.mxu0 0
          %1830 = vmatprep.subr.bf16.mxu0 0
          %1831 = vmatpush1.bf16.msra.mxu0 0
          %1832 = vmatprep.subr.bf16.mxu0 0
          %1833 = vmatpush1.bf16.msra.mxu0 0
          %1834 = vmatprep.subr.bf16.mxu0 0
          %1835 = vmatpush1.bf16.msra.mxu0 0
          %1836 = vmatprep.subr.bf16.mxu0 0
          %1837 = vmatpush1.bf16.msra.mxu0 0
          %1838 = vmatprep.subr.bf16.mxu0 0
          %1839 = vmatpush1.bf16.msra.mxu0 0
          %1840 = vmatprep.subr.bf16.mxu0 0
          %1841 = vmatpush1.bf16.msra.mxu0 0
          %1842 = vmatprep.subr.bf16.mxu0 0
          %1843 = vmatpush1.bf16.msra.mxu0 0
          %1844 = vmatprep.subr.bf16.mxu0 0
          %1845 = vmatpush1.bf16.msra.mxu0 0
          %1846 = vmatprep.subr.bf16.mxu0 0
          %1847 = vmatpush1.bf16.msra.mxu0 0
          %1848 = vmatprep.subr.bf16.mxu0 0
          %1849 = vmatpush1.bf16.msra.mxu0 0
          %1850 = vmatprep.subr.bf16.mxu0 0
          %1851 = vmatpush1.bf16.msra.mxu0 0
          %1852 = vmatprep.mubr.bf16.mxu0 0
          %1853 = vmatmul.mubr.bf16.gmra.mrb[0].mxu0 %v1818
          %v1854 = vpop.f32.mrb[0].mxu0
          %v1855 = vadd.f32 %v1803, %v1854
          %v1856 = vpop.f32.mrb[0].mxu0
          %v1857 = vpop.f32.mrb[0].mxu0
          %v1858 = vpop.f32.mrb[0].mxu0
          %1859 = vdwg.mxu0
          %v1860 = vmax.f32 %v1855, 0.0
          %v1861 = vpack.c.bf16 %v1860, %v1860
          %v1862 = vld [vmem:[#allocation14] sm:$0xf]
          %v1863 = vld [vmem:[#allocation14 + $0x4] sm:$0xf]
          %v1864 = vld [vmem:[#allocation14 + $0x8] sm:$0xf]
          %v1865 = vld [vmem:[#allocation14 + $0xc] sm:$0xf]
          %v1866 = vld [vmem:[#allocation14 + $0x10] sm:$0xf]
          %v1867 = vld [vmem:[#allocation14 + $0x14] sm:$0xf]
          %v1868 = vld [vmem:[#allocation14 + $0x18] sm:$0xf]
          %v1869 = vld [vmem:[#allocation14 + $0x1c] sm:$0xf]
          %v1870 = vld [vmem:[%s15] sm:$0x1]
          %v1872 = vlaneseq
          %v1873 = vshrl.u32 %v1872, 7
          %v1874 = vsub.s32 0, %v1873
          %v1875 = vrot.slane %v1870, %v1874
          %v1885 = vunpack.c.l.b16 %v1862
          %v1886 = vunpack.c.l.b16 %v1863
          %v1887 = vunpack.c.l.b16 %v1864
          %v1888 = vunpack.c.l.b16 %v1865
          %v1889 = vunpack.c.l.b16 %v1866
          %v1890 = vunpack.c.l.b16 %v1867
          %v1891 = vunpack.c.l.b16 %v1868
          %v1892 = vunpack.c.l.b16 %v1869
          %v1893 = vpack.c.b16 %v1886, %v1885
          %v1894 = vpack.c.b16 %v1888, %v1887
          %v1895 = vpack.c.b16 %v1890, %v1889
          %v1896 = vpack.c.b16 %v1892, %v1891
          %vm1901 = vcmask 523264
          %v1903 = vsel %vm1901, %v1861, 0
          %1905 = vmatprep.subr.bf16.mxu0 0
          %1906 = vmatpush1.bf16.msra.mxu0 %v1893
          %1907 = vmatprep.subr.bf16.mxu0 0
          %1908 = vmatpush1.bf16.msra.mxu0 %v1894
          %1909 = vmatprep.subr.bf16.mxu0 0
          %1910 = vmatpush1.bf16.msra.mxu0 %v1895
          %1911 = vmatprep.subr.bf16.mxu0 0
          %1912 = vmatpush1.bf16.msra.mxu0 %v1896
          %1913 = vmatprep.subr.bf16.mxu0 0
          %1914 = vmatpush1.bf16.msra.mxu0 0
          %1915 = vmatprep.subr.bf16.mxu0 0
          %1916 = vmatpush1.bf16.msra.mxu0 0
          %1917 = vmatprep.subr.bf16.mxu0 0
          %1918 = vmatpush1.bf16.msra.mxu0 0
          %1919 = vmatprep.subr.bf16.mxu0 0
          %1920 = vmatpush1.bf16.msra.mxu0 0
          %1921 = vmatprep.subr.bf16.mxu0 0
          %1922 = vmatpush1.bf16.msra.mxu0 0
          %1923 = vmatprep.subr.bf16.mxu0 0
          %1924 = vmatpush1.bf16.msra.mxu0 0
          %1925 = vmatprep.subr.bf16.mxu0 0
          %1926 = vmatpush1.bf16.msra.mxu0 0
          %1927 = vmatprep.subr.bf16.mxu0 0
          %1928 = vmatpush1.bf16.msra.mxu0 0
          %1929 = vmatprep.subr.bf16.mxu0 0
          %1930 = vmatpush1.bf16.msra.mxu0 0
          %1931 = vmatprep.subr.bf16.mxu0 0
          %1932 = vmatpush1.bf16.msra.mxu0 0
          %1933 = vmatprep.subr.bf16.mxu0 0
          %1934 = vmatpush1.bf16.msra.mxu0 0
          %1935 = vmatprep.subr.bf16.mxu0 0
          %1936 = vmatpush1.bf16.msra.mxu0 0
          %1937 = vmatprep.mubr.bf16.mxu0 0
          %1938 = vmatmul.mubr.bf16.gmra.mrb[0].mxu0 %v1903
          %v1939 = vpop.f32.mrb[0].mxu0
          %v1940 = vadd.f32 %v1875, %v1939
          %v1941 = vpop.f32.mrb[0].mxu0
          %v1942 = vpop.f32.mrb[0].mxu0
          %v1943 = vpop.f32.mrb[0].mxu0
          %1944 = vdwg.mxu0
          %v1945 = vmax.f32 %v1940, 0.0
          %v1946 = vpack.c.bf16 %v1945, %v1945
          %v1947 = vld [vmem:[#allocation15] sm:$0xf]
          %v1948 = vld [vmem:[#allocation15 + $0x4] sm:$0xf]
          %v1949 = vld [vmem:[#allocation15 + $0x8] sm:$0xf]
          %v1950 = vld [vmem:[#allocation15 + $0xc] sm:$0xf]
          %v1951 = vld [vmem:[#allocation15 + $0x10] sm:$0xf]
          %v1952 = vld [vmem:[#allocation15 + $0x14] sm:$0xf]
          %v1953 = vld [vmem:[#allocation15 + $0x18] sm:$0xf]
          %v1954 = vld [vmem:[#allocation15 + $0x1c] sm:$0xf]
          %v1955 = vld [vmem:[%s17] sm:$0x1]
          %v1957 = vlaneseq
          %v1958 = vshrl.u32 %v1957, 7
          %v1959 = vsub.s32 0, %v1958
          %v1960 = vrot.slane %v1955, %v1959
          %v1970 = vunpack.c.l.b16 %v1947
          %v1971 = vunpack.c.l.b16 %v1948
          %v1972 = vunpack.c.l.b16 %v1949
          %v1973 = vunpack.c.l.b16 %v1950
          %v1974 = vunpack.c.l.b16 %v1951
          %v1975 = vunpack.c.l.b16 %v1952
          %v1976 = vunpack.c.l.b16 %v1953
          %v1977 = vunpack.c.l.b16 %v1954
          %v1978 = vpack.c.b16 %v1971, %v1970
          %v1979 = vpack.c.b16 %v1973, %v1972
          %v1980 = vpack.c.b16 %v1975, %v1974
          %v1981 = vpack.c.b16 %v1977, %v1976
          %v1987 = vsel %vm1901, %v1946, 0
          %1989 = vmatprep.subr.bf16.mxu0 0
          %1990 = vmatpush1.bf16.msra.mxu0 %v1978
          %1991 = vmatprep.subr.bf16.mxu0 0
          %1992 = vmatpush1.bf16.msra.mxu0 %v1979
          %1993 = vmatprep.subr.bf16.mxu0 0
          %1994 = vmatpush1.bf16.msra.mxu0 %v1980
          %1995 = vmatprep.subr.bf16.mxu0 0
          %1996 = vmatpush1.bf16.msra.mxu0 %v1981
          %1997 = vmatprep.subr.bf16.mxu0 0
          %1998 = vmatpush1.bf16.msra.mxu0 0
          %1999 = vmatprep.subr.bf16.mxu0 0
          %2000 = vmatpush1.bf16.msra.mxu0 0
          %2001 = vmatprep.subr.bf16.mxu0 0
          %2002 = vmatpush1.bf16.msra.mxu0 0
          %2003 = vmatprep.subr.bf16.mxu0 0
          %2004 = vmatpush1.bf16.msra.mxu0 0
          %2005 = vmatprep.subr.bf16.mxu0 0
          %2006 = vmatpush1.bf16.msra.mxu0 0
          %2007 = vmatprep.subr.bf16.mxu0 0
          %2008 = vmatpush1.bf16.msra.mxu0 0
          %2009 = vmatprep.subr.bf16.mxu0 0
          %2010 = vmatpush1.bf16.msra.mxu0 0
          %2011 = vmatprep.subr.bf16.mxu0 0
          %2012 = vmatpush1.bf16.msra.mxu0 0
          %2013 = vmatprep.subr.bf16.mxu0 0
          %2014 = vmatpush1.bf16.msra.mxu0 0
          %2015 = vmatprep.subr.bf16.mxu0 0
          %2016 = vmatpush1.bf16.msra.mxu0 0
          %2017 = vmatprep.subr.bf16.mxu0 0
          %2018 = vmatpush1.bf16.msra.mxu0 0
          %2019 = vmatprep.subr.bf16.mxu0 0
          %2020 = vmatpush1.bf16.msra.mxu0 0
          %2021 = vmatprep.mubr.bf16.mxu0 0
          %2022 = vmatmul.mubr.bf16.gmra.mrb[0].mxu0 %v1987
          %v2023 = vpop.f32.mrb[0].mxu0
          %v2024 = vadd.f32 %v1960, %v2023
          %v2025 = vpop.f32.mrb[0].mxu0
          %v2026 = vpop.f32.mrb[0].mxu0
          %v2027 = vpop.f32.mrb[0].mxu0
          %2028 = vdwg.mxu0
          %2029 = vst [vmem:[%s840] sm:$0xff] %v2024
        $region132: #{_lambda_.1} parent=91 // pred_fallthru
          _
        %p2030 = scmp.lt.s32.totalorder %s42, 1
        %s2031 = scalar_select %p2030, %s42, 1
        %s2032 = smul.addr %s2031, 8
        %s2033 = scalar_lea.vmem %s18, %s2032
        // Predicated region
        $region133: #{_lambda_.1} parent=91 // pred_check
          %p2034 = pneg %p486
        $region134: #{_lambda_.1} parent=91 // pred_check_branch
          %2036 = sbr.rel (%p2034) target = $region136
        $region135: #{_lambda_.1} parent=91 // pred_region
          _
        $region136: #{_lambda_.1} parent=91 // pred_fallthru
          _
      $region92: #{_lambda_.1} parent=5 // pred_fallthru
        _
      %p2037 = scmp.le.s32.totalorder 2, %s33
      // Predicated region
      $region137: #{_lambda_.1} parent=5 // pred_check
        %p2038 = pneg %p2037
      $region138: #{_lambda_.1} parent=5 // pred_check_branch
        %2040 = sbr.rel (%p2038) target = $region140
      $region139: #{_lambda_.1} parent=5 // pred_region
        %s2041 = ssub.s32 %s33, 2
        // Predicated region
        $region141: #{_lambda_.1} parent=139 // pred_check
          %p2042 = pneg %p492
        $region142: #{_lambda_.1} parent=139 // pred_check_branch
          %2044 = sbr.rel (%p2042) target = $region144
        $region143: #{_lambda_.1} parent=139 // pred_region
          %p2045 = scmp.lt.s32.totalorder %s44, 1
          %s2046 = scalar_select %p2045, %s44, 1
          %s2047 = smul.addr %s2046, 8
          %s2048 = scalar_lea.vmem %s18, %s2047
        $region144: #{_lambda_.1} parent=139 // pred_fallthru
          _
      $region140: #{_lambda_.1} parent=5 // pred_fallthru
        _
    $region6: #{_lambda_.1} parent=1 // loop_footer
      %s37 = sadd.s32 1, %s33
    $region7: #{_lambda_.1} parent=1 // loop_footer_branch
      %32 = sbr.rel target = $region3
    $region8: #{_lambda_.1} parent=1 // loop_exit
      _
    %2049 = vsyncpa [#allocation5], 1
    %s2050 = scalar_lea.sflag [#allocation5], 1
    %2051 = vsyncpa %s2050, 1
    %2052 = vsyncpa [#allocation7], 1
    %s2053 = scalar_lea.sflag [#allocation7], 1
    %2054 = vsyncpa %s2053, 1
    %2055 = vsyncpa [#allocation10], 1
    %s2056 = scalar_lea.sflag [#allocation10], 1
    %2057 = vsyncpa %s2056, 1
    %2058 = vsyncpa [#allocation13], 1
    %2059 = vsyncpa [#allocation16], 1

</llo_original>
